<compile_context>
chip_gen: v6e
topology: v6e:2x2x1
jax: 0.10.0
libtpu: 0.0.40
codegen_flags: <defaults>
</compile_context>

<pallas_src>
import numpy as np

import jax
import jax.numpy as jnp
from jax.experimental import pallas as pl
from jax.experimental.pallas import tpu as pltpu


# ---------------------------------------------------------------------------
# Host-side tree representation (mirrors the PyTorch node objects)
# ---------------------------------------------------------------------------
class Node:
    def __init__(self, word=None, children=()):
        self.word = word                       # int token id or None
        self.idx = 0 if word is not None else None
        self.children = list(children)


def linearize(node, compute_nodes, output_map):
    """Post-order walk identical to BinaryTreeLSTM.recursive_forward.

    Returns the compute-node index whose state is this node's effective state.
    `compute_nodes` gets (word_or_None, left_idx, right_idx), -1 == zero child.
    `output_map` records, per appended output row, which compute node's h it
    is (single-child nodes re-emit their child's h, like the torch code).
    """
    if len(node.children) == 0:
        child_idxs = []
    else:
        assert len(node.children) <= 2
        child_idxs = [linearize(ch, compute_nodes, output_map)
                      for ch in node.children]

    if len(node.children) == 1:
        state_idx = child_idxs[0]              # node_forward returns child state
    else:
        if len(node.children) == 0:
            l = r = -1                          # zero left/right states
        else:
            l, r = child_idxs
        state_idx = len(compute_nodes)
        compute_nodes.append((node.word, l, r))
    output_map.append(state_idx)
    return state_idx


def _round_up(x, m):
    return ((x + m - 1) // m) * m


def build_level_schedule(compute_nodes, embed_table_np, E, E_pad):
    """Group compute nodes by tree depth and build padded per-level batches.

    Returns (left_idx, right_idx, word_embeds, num_levels, M_pad, slot) where
    `slot[i]` is the row of compute node i in the (S, H_pad) state buffers and
    rows [0, M_pad) of the state buffers are the all-zeros "no child" block.
    """
    N = len(compute_nodes)
    levels = []
    for (_, l, r) in compute_nodes:            # post-order => children first
        lv = 0
        if l >= 0:
            lv = max(lv, levels[l] + 1)
        if r >= 0:
            lv = max(lv, levels[r] + 1)
        levels.append(lv)
    num_levels = max(levels) + 1

    counts = [0] * num_levels
    pos = []
    for lv in levels:
        pos.append(counts[lv])
        counts[lv] += 1
    M_pad = max(8, _round_up(max(counts), 8))  # f32 sublane multiple

    slot = [(levels[i] + 1) * M_pad + pos[i] for i in range(N)]

    R = num_levels * M_pad                     # schedule rows (level-major)
    left = np.zeros((R,), np.int32)            # 0 == zero-state block
    right = np.zeros((R,), np.int32)
    we = np.zeros((R, E_pad), np.float32)
    for i, (w, l, r) in enumerate(compute_nodes):
        row = levels[i] * M_pad + pos[i]
        left[row] = slot[l] if l >= 0 else 0
        right[row] = slot[r] if r >= 0 else 0
        if w is not None:
            we[row, :E] = embed_table_np[w]

    return (jnp.asarray(left), jnp.asarray(right), jnp.asarray(we),
            num_levels, M_pad, np.asarray(slot, np.int64))


def pad_gate_params(W_gates, b_gates, E, H, E_pad, H_pad):
    """Pack the four gate Linears into a lane-padded fused weight/bias.

    Layout: x = [we(E_pad) | h_l(H_pad) | h_r(H_pad)],  gates = [i|f|o|u],
    each gate occupying a lane-aligned 128-wide column block.  Padded rows /
    columns are zero, which keeps padded state lanes exactly zero.
    """
    D_pad = E_pad + 2 * H_pad
    W_pad = np.zeros((D_pad, 4 * H_pad), np.float32)
    b_pad = np.zeros((1, 4 * H_pad), np.float32)
    for g, (Wg, bg) in enumerate(zip(W_gates, b_gates)):
        Wg = np.asarray(Wg)
        bg = np.asarray(bg)
        c0 = g * H_pad
        W_pad[0:E, c0:c0 + H] = Wg[0:E, :]
        W_pad[E_pad:E_pad + H, c0:c0 + H] = Wg[E:E + H, :]
        W_pad[E_pad + H_pad:E_pad + H_pad + H, c0:c0 + H] = Wg[E + H:E + 2 * H, :]
        b_pad[0, c0:c0 + H] = bg
    return jnp.asarray(W_pad), jnp.asarray(b_pad)


# ---------------------------------------------------------------------------
# Pallas kernel: one grid step == one tree level (batch of independent nodes)
# ---------------------------------------------------------------------------
def tree_lstm_kernel(left_ref, right_ref,          # scalar-prefetch (SMEM)
                     we_ref, w_ref, b_ref,         # inputs (VMEM)
                     c_out, h_out,                 # outputs, VMEM-resident
                     hl_s, hr_s, cc_s):            # VMEM gather scratch
    L = pl.program_id(0)
    M, Hp = hl_s.shape                             # level batch, padded hidden
    Ep = we_ref.shape[1]                           # padded embed dim

    # Rows [0, M) of the state buffers are the all-zeros "no child" block.
    @pl.when(L == 0)
    def _():
        c_out[pl.ds(0, M), :] = jnp.zeros((M, Hp), jnp.float32)
        h_out[pl.ds(0, M), :] = jnp.zeros((M, Hp), jnp.float32)

    base = L * M

    # Gather child states for every node of this level.  Child row indices
    # come from SMEM; index 0 points at the zero block (leaves / padded rows).
    for m in range(M):
        li = left_ref[base + m]
        ri = right_ref[base + m]
        hl_s[pl.ds(m, 1), :] = h_out[pl.ds(li, 1), :]
        hr_s[pl.ds(m, 1), :] = h_out[pl.ds(ri, 1), :]
        cc_s[pl.ds(m, 1), :] = c_out[pl.ds(li, 1), :] + c_out[pl.ds(ri, 1), :]

    # Level-batched fused gate matmul: cat([we, h_l, h_r], 1) @ W expressed as
    # a row-split sum so every operand stays lane-aligned (no concat copies).
    z = (jnp.dot(we_ref[...], w_ref[0:Ep, :],
                 preferred_element_type=jnp.float32)
         + jnp.dot(hl_s[...], w_ref[Ep:Ep + Hp, :],
                   preferred_element_type=jnp.float32)
         + jnp.dot(hr_s[...], w_ref[Ep + Hp:Ep + 2 * Hp, :],
                   preferred_element_type=jnp.float32)
         + b_ref[...])                             # (M, 4*Hp)

    ig = jax.nn.sigmoid(z[:, 0 * Hp:1 * Hp])
    fg = jax.nn.sigmoid(z[:, 1 * Hp:2 * Hp])
    og = jax.nn.sigmoid(z[:, 2 * Hp:3 * Hp])
    ug = jnp.tanh(z[:, 3 * Hp:4 * Hp])

    c = ig * ug + fg * cc_s[...]                   # fg*(c_l + c_r)
    h = og * jnp.tanh(c)

    off = pl.multiple_of((L + 1) * M, M)           # sublane-aligned level block
    c_out[pl.ds(off, M), :] = c
    h_out[pl.ds(off, M), :] = h


def run_tree_lstm(left_idx, right_idx, word_embeds, W_pad, b_pad,
                  num_levels, M_pad):
    """left/right: int32[num_levels*M_pad] state rows; word_embeds padded."""
    R, E_pad = word_embeds.shape
    D_pad, H4 = W_pad.shape
    H_pad = H4 // 4
    assert D_pad == E_pad + 2 * H_pad
    assert R == num_levels * M_pad
    S = (num_levels + 1) * M_pad                   # + zero-state block

    vmem_bytes = 4 * (D_pad * H4                   # W (resident)
                      + H4                         # bias
                      + 2 * M_pad * E_pad          # double-buffered we tiles
                      + 2 * S * H_pad              # resident c/h outputs
                      + 3 * M_pad * H_pad)         # gather scratch
    vmem_limit = int(min(max(2 * vmem_bytes, 8 << 20), 120 << 20))

    grid_spec = pltpu.PrefetchScalarGridSpec(
        num_scalar_prefetch=2,
        grid=(num_levels,),
        in_specs=[
            pl.BlockSpec((M_pad, E_pad), lambda L, l, r: (L, 0)),   # level embeds
            pl.BlockSpec((D_pad, H4), lambda L, l, r: (0, 0)),      # fused W
            pl.BlockSpec((1, H4), lambda L, l, r: (0, 0)),          # fused bias
        ],
        out_specs=[
            pl.BlockSpec((S, H_pad), lambda L, l, r: (0, 0)),       # c states
            pl.BlockSpec((S, H_pad), lambda L, l, r: (0, 0)),       # h states
        ],
        scratch_shapes=[
            pltpu.VMEM((M_pad, H_pad), jnp.float32),                # h_left
            pltpu.VMEM((M_pad, H_pad), jnp.float32),                # h_right
            pltpu.VMEM((M_pad, H_pad), jnp.float32),                # c_l + c_r
        ],
    )

    return pl.pallas_call(
        tree_lstm_kernel,
        out_shape=(jax.ShapeDtypeStruct((S, H_pad), jnp.float32),
                   jax.ShapeDtypeStruct((S, H_pad), jnp.float32)),
        grid_spec=grid_spec,
        compiler_params=pltpu.CompilerParams(
            dimension_semantics=("arbitrary",),    # levels form a dep chain
            vmem_limit_bytes=vmem_limit),
    )(left_idx, right_idx, word_embeds, W_pad, b_pad)


# ---------------------------------------------------------------------------
# Pure-JAX reference (direct transcription of the PyTorch module)
# ---------------------------------------------------------------------------
def reference_forward(subtree, embed_table, W_gates, b_gates, E, H):
    W_ig, W_fg, W_og, W_u = W_gates
    b_ig, b_fg, b_og, b_u = b_gates
    outputs = []

    def node_forward(node, child_states):
        if node.idx is not None:
            we = embed_table[node.word][None, :]
        else:
            we = jnp.zeros((1, E), jnp.float32)
        if len(child_states) == 1:
            return child_states[0]
        (lc, lh), (rc, rh) = child_states
        x = jnp.concatenate([we, lh, rh], axis=1)
        i = jax.nn.sigmoid(x @ W_ig + b_ig)
        f = jax.nn.sigmoid(x @ W_fg + b_fg)
        o = jax.nn.sigmoid(x @ W_og + b_og)
        u = jnp.tanh(x @ W_u + b_u)
        c = i * u + f * lc + f * rc
        h = o * jnp.tanh(c)
        return (c, h)

    def rec(node):
        if len(node.children) == 0:
            z = jnp.zeros((1, H), jnp.float32)
            child_states = [(z, z), (z, z)]
        else:
            child_states = [rec(ch) for ch in node.children]
        state = node_forward(node, child_states)
        outputs.append(state[1])
        return state

    final = rec(subtree)
    return jnp.concatenate(outputs, 0), final


# ---------------------------------------------------------------------------
if __name__ == "__main__":
    key = jax.random.PRNGKey(0)
    V, E, H = 50, 16, 32                    # word_vocab, word_embed_dim, hidden
    D = E + 2 * H
    E_pad = _round_up(E, 8)
    H_pad = _round_up(H, 128)               # lane-dense internal hidden dim

    ks = jax.random.split(key, 9)
    embed_table = jax.random.normal(ks[0], (V, E), jnp.float32) * 0.1
    W_gates = tuple(jax.random.normal(k, (D, H), jnp.float32) * 0.1
                    for k in ks[1:5])       # ig, fg, og, u
    b_gates = tuple(jax.random.normal(k, (H,), jnp.float32) * 0.1
                    for k in ks[5:9])

    W_pad, b_pad = pad_gate_params(W_gates, b_gates, E, H, E_pad, H_pad)

    # Small tree: root -> A -> (B -> (leaf3, leaf7), C -> (leaf11))
    # C is a single-child node, exercising the "return child state" branch.
    leaf_d = Node(word=3)
    leaf_e = Node(word=7)
    leaf_f = Node(word=11)
    node_b = Node(children=[leaf_d, leaf_e])
    node_c = Node(children=[leaf_f])
    node_a = Node(children=[node_b, node_c])
    root = Node(children=[node_a])

    # The module processes root.children[0].
    compute_nodes, output_map = [], []
    top = linearize(root.children[0], compute_nodes, output_map)

    embed_table_np = np.asarray(embed_table)
    (left_idx, right_idx, word_embeds,
     num_levels, M_pad, slot) = build_level_schedule(
        compute_nodes, embed_table_np, E, E_pad)

    c_all, h_all = run_tree_lstm(left_idx, right_idx, word_embeds,
                                 W_pad, b_pad, num_levels, M_pad)
    jax.block_until_ready((c_all, h_all))

    # Re-expand to the module's output ordering (cat of every appended h).
    out_rows = jnp.asarray(slot[np.asarray(output_map)], jnp.int32)
    outputs = h_all[out_rows, :H]
    final_c = c_all[int(slot[top]), :H][None, :]
    final_h = h_all[int(slot[top]), :H][None, :]

    # Verify against the pure-JAX transcription of the PyTorch forward.
    ref_out, (ref_c, ref_h) = reference_forward(root.children[0], embed_table,
                                                W_gates, b_gates, E, H)
    assert outputs.shape == ref_out.shape
    assert jnp.allclose(outputs, ref_out, atol=1e-5, rtol=1e-5)
    assert jnp.allclose(final_c, ref_c, atol=1e-5, rtol=1e-5)
    assert jnp.allclose(final_h, ref_h, atol=1e-5, rtol=1e-5)

    print("KERNEL_OK")
</pallas_src>

<mosaic_0001>
module attributes {stable_mosaic.version = 11 : i64} {
  func.func @tree_lstm_kernel(%arg0: i32, %arg1: memref<24xi32, #tpu.memory_space<smem>>, %arg2: memref<24xi32, #tpu.memory_space<smem>>, %arg3: memref<8x16xf32, #tpu.memory_space<vmem>>, %arg4: memref<272x512xf32, #tpu.memory_space<vmem>>, %arg5: memref<1x512xf32, #tpu.memory_space<vmem>>, %arg6: memref<32x128xf32, #tpu.memory_space<vmem>>, %arg7: memref<32x128xf32, #tpu.memory_space<vmem>>, %arg8: memref<8x128xf32, #tpu.memory_space<vmem>>, %arg9: memref<8x128xf32, #tpu.memory_space<vmem>>, %arg10: memref<8x128xf32, #tpu.memory_space<vmem>>) attributes {dimension_semantics = [#tpu.dimension_semantics<arbitrary>], iteration_bounds = array<i64: 3>, scalar_prefetch = 2 : i64, scratch_operands = 3 : i64, tpu.core_type = #tpu.core_type<tc>, window_params = [{transform_indices = @transform_0, window_bounds = array<i64: 8, 16>}, {pipeline_mode = #tpu.pipeline_mode<synchronous>, transform_indices = @transform_1, window_bounds = array<i64: 272, 512>}, {pipeline_mode = #tpu.pipeline_mode<synchronous>, transform_indices = @transform_2, window_bounds = array<i64: 1, 512>}, {pipeline_mode = #tpu.pipeline_mode<synchronous>, transform_indices = @transform_3, window_bounds = array<i64: 32, 128>}, {pipeline_mode = #tpu.pipeline_mode<synchronous>, transform_indices = @transform_4, window_bounds = array<i64: 32, 128>}]} {
    %c0_i32 = arith.constant 0 : i32
    %0 = arith.cmpi eq, %arg0, %c0_i32 : i32
    %1 = arith.extui %0 : i1 to i32
    %c0_i32_0 = arith.constant 0 : i32
    %2 = arith.cmpi ne, %1, %c0_i32_0 : i32
    scf.if %2 {
      %cst_105 = arith.constant 0.000000e+00 : f32
      %195 = vector.broadcast %cst_105 : f32 to vector<8x128xf32>
      %c0_106 = arith.constant 0 : index
      %c0_107 = arith.constant 0 : index
      %196 = vector.load %arg6[%c0_106, %c0_107] : memref<32x128xf32, #tpu.memory_space<vmem>>, vector<8x128xf32>
      tpu.vector_store %arg6[%c0_106, %c0_107], %195 {strides = array<i32>} : memref<32x128xf32, #tpu.memory_space<vmem>>, vector<8x128xf32>,
      %cst_108 = arith.constant 0.000000e+00 : f32
      %197 = vector.broadcast %cst_108 : f32 to vector<8x128xf32>
      %c0_109 = arith.constant 0 : index
      %c0_110 = arith.constant 0 : index
      %198 = vector.load %arg7[%c0_109, %c0_110] : memref<32x128xf32, #tpu.memory_space<vmem>>, vector<8x128xf32>
      tpu.vector_store %arg7[%c0_109, %c0_110], %197 {strides = array<i32>} : memref<32x128xf32, #tpu.memory_space<vmem>>, vector<8x128xf32>,
    } else {
    }
    %c8_i32 = arith.constant 8 : i32
    %3 = arith.muli %arg0, %c8_i32 : i32
    %c0_i32_1 = arith.constant 0 : i32
    %4 = arith.addi %3, %c0_i32_1 : i32
    %5 = arith.index_cast %4 : i32 to index
    %6 = memref.load %arg1[%5] : memref<24xi32, #tpu.memory_space<smem>>
    %c0_i32_2 = arith.constant 0 : i32
    %7 = arith.addi %3, %c0_i32_2 : i32
    %8 = arith.index_cast %7 : i32 to index
    %9 = memref.load %arg2[%8] : memref<24xi32, #tpu.memory_space<smem>>
    %10 = arith.index_cast %6 : i32 to index
    %c0 = arith.constant 0 : index
    %11 = vector.load %arg7[%10, %c0] : memref<32x128xf32, #tpu.memory_space<vmem>>, vector<1x128xf32>
    %c0_3 = arith.constant 0 : index
    %c0_4 = arith.constant 0 : index
    %12 = vector.load %arg8[%c0_3, %c0_4] : memref<8x128xf32, #tpu.memory_space<vmem>>, vector<1x128xf32>
    tpu.vector_store %arg8[%c0_3, %c0_4], %11 {strides = array<i32>} : memref<8x128xf32, #tpu.memory_space<vmem>>, vector<1x128xf32>,
    %13 = arith.index_cast %9 : i32 to index
    %c0_5 = arith.constant 0 : index
    %14 = vector.load %arg7[%13, %c0_5] : memref<32x128xf32, #tpu.memory_space<vmem>>, vector<1x128xf32>
    %c0_6 = arith.constant 0 : index
    %c0_7 = arith.constant 0 : index
    %15 = vector.load %arg9[%c0_6, %c0_7] : memref<8x128xf32, #tpu.memory_space<vmem>>, vector<1x128xf32>
    tpu.vector_store %arg9[%c0_6, %c0_7], %14 {strides = array<i32>} : memref<8x128xf32, #tpu.memory_space<vmem>>, vector<1x128xf32>,
    %16 = arith.index_cast %6 : i32 to index
    %c0_8 = arith.constant 0 : index
    %17 = vector.load %arg6[%16, %c0_8] : memref<32x128xf32, #tpu.memory_space<vmem>>, vector<1x128xf32>
    %18 = arith.index_cast %9 : i32 to index
    %c0_9 = arith.constant 0 : index
    %19 = vector.load %arg6[%18, %c0_9] : memref<32x128xf32, #tpu.memory_space<vmem>>, vector<1x128xf32>
    %20 = arith.addf %17, %19 : vector<1x128xf32>
    %c0_10 = arith.constant 0 : index
    %c0_11 = arith.constant 0 : index
    %21 = vector.load %arg10[%c0_10, %c0_11] : memref<8x128xf32, #tpu.memory_space<vmem>>, vector<1x128xf32>
    tpu.vector_store %arg10[%c0_10, %c0_11], %20 {strides = array<i32>} : memref<8x128xf32, #tpu.memory_space<vmem>>, vector<1x128xf32>,
    %c1_i32 = arith.constant 1 : i32
    %22 = arith.addi %3, %c1_i32 : i32
    %23 = arith.index_cast %22 : i32 to index
    %24 = memref.load %arg1[%23] : memref<24xi32, #tpu.memory_space<smem>>
    %c1_i32_12 = arith.constant 1 : i32
    %25 = arith.addi %3, %c1_i32_12 : i32
    %26 = arith.index_cast %25 : i32 to index
    %27 = memref.load %arg2[%26] : memref<24xi32, #tpu.memory_space<smem>>
    %28 = arith.index_cast %24 : i32 to index
    %c0_13 = arith.constant 0 : index
    %29 = vector.load %arg7[%28, %c0_13] : memref<32x128xf32, #tpu.memory_space<vmem>>, vector<1x128xf32>
    %c1 = arith.constant 1 : index
    %c0_14 = arith.constant 0 : index
    %30 = vector.load %arg8[%c1, %c0_14] : memref<8x128xf32, #tpu.memory_space<vmem>>, vector<1x128xf32>
    tpu.vector_store %arg8[%c1, %c0_14], %29 {strides = array<i32>} : memref<8x128xf32, #tpu.memory_space<vmem>>, vector<1x128xf32>,
    %31 = arith.index_cast %27 : i32 to index
    %c0_15 = arith.constant 0 : index
    %32 = vector.load %arg7[%31, %c0_15] : memref<32x128xf32, #tpu.memory_space<vmem>>, vector<1x128xf32>
    %c1_16 = arith.constant 1 : index
    %c0_17 = arith.constant 0 : index
    %33 = vector.load %arg9[%c1_16, %c0_17] : memref<8x128xf32, #tpu.memory_space<vmem>>, vector<1x128xf32>
    tpu.vector_store %arg9[%c1_16, %c0_17], %32 {strides = array<i32>} : memref<8x128xf32, #tpu.memory_space<vmem>>, vector<1x128xf32>,
    %34 = arith.index_cast %24 : i32 to index
    %c0_18 = arith.constant 0 : index
    %35 = vector.load %arg6[%34, %c0_18] : memref<32x128xf32, #tpu.memory_space<vmem>>, vector<1x128xf32>
    %36 = arith.index_cast %27 : i32 to index
    %c0_19 = arith.constant 0 : index
    %37 = vector.load %arg6[%36, %c0_19] : memref<32x128xf32, #tpu.memory_space<vmem>>, vector<1x128xf32>
    %38 = arith.addf %35, %37 : vector<1x128xf32>
    %c1_20 = arith.constant 1 : index
    %c0_21 = arith.constant 0 : index
    %39 = vector.load %arg10[%c1_20, %c0_21] : memref<8x128xf32, #tpu.memory_space<vmem>>, vector<1x128xf32>
    tpu.vector_store %arg10[%c1_20, %c0_21], %38 {strides = array<i32>} : memref<8x128xf32, #tpu.memory_space<vmem>>, vector<1x128xf32>,
    %c2_i32 = arith.constant 2 : i32
    %40 = arith.addi %3, %c2_i32 : i32
    %41 = arith.index_cast %40 : i32 to index
    %42 = memref.load %arg1[%41] : memref<24xi32, #tpu.memory_space<smem>>
    %c2_i32_22 = arith.constant 2 : i32
    %43 = arith.addi %3, %c2_i32_22 : i32
    %44 = arith.index_cast %43 : i32 to index
    %45 = memref.load %arg2[%44] : memref<24xi32, #tpu.memory_space<smem>>
    %46 = arith.index_cast %42 : i32 to index
    %c0_23 = arith.constant 0 : index
    %47 = vector.load %arg7[%46, %c0_23] : memref<32x128xf32, #tpu.memory_space<vmem>>, vector<1x128xf32>
    %c2 = arith.constant 2 : index
    %c0_24 = arith.constant 0 : index
    %48 = vector.load %arg8[%c2, %c0_24] : memref<8x128xf32, #tpu.memory_space<vmem>>, vector<1x128xf32>
    tpu.vector_store %arg8[%c2, %c0_24], %47 {strides = array<i32>} : memref<8x128xf32, #tpu.memory_space<vmem>>, vector<1x128xf32>,
    %49 = arith.index_cast %45 : i32 to index
    %c0_25 = arith.constant 0 : index
    %50 = vector.load %arg7[%49, %c0_25] : memref<32x128xf32, #tpu.memory_space<vmem>>, vector<1x128xf32>
    %c2_26 = arith.constant 2 : index
    %c0_27 = arith.constant 0 : index
    %51 = vector.load %arg9[%c2_26, %c0_27] : memref<8x128xf32, #tpu.memory_space<vmem>>, vector<1x128xf32>
    tpu.vector_store %arg9[%c2_26, %c0_27], %50 {strides = array<i32>} : memref<8x128xf32, #tpu.memory_space<vmem>>, vector<1x128xf32>,
    %52 = arith.index_cast %42 : i32 to index
    %c0_28 = arith.constant 0 : index
    %53 = vector.load %arg6[%52, %c0_28] : memref<32x128xf32, #tpu.memory_space<vmem>>, vector<1x128xf32>
    %54 = arith.index_cast %45 : i32 to index
    %c0_29 = arith.constant 0 : index
    %55 = vector.load %arg6[%54, %c0_29] : memref<32x128xf32, #tpu.memory_space<vmem>>, vector<1x128xf32>
    %56 = arith.addf %53, %55 : vector<1x128xf32>
    %c2_30 = arith.constant 2 : index
    %c0_31 = arith.constant 0 : index
    %57 = vector.load %arg10[%c2_30, %c0_31] : memref<8x128xf32, #tpu.memory_space<vmem>>, vector<1x128xf32>
    tpu.vector_store %arg10[%c2_30, %c0_31], %56 {strides = array<i32>} : memref<8x128xf32, #tpu.memory_space<vmem>>, vector<1x128xf32>,
    %c3_i32 = arith.constant 3 : i32
    %58 = arith.addi %3, %c3_i32 : i32
    %59 = arith.index_cast %58 : i32 to index
    %60 = memref.load %arg1[%59] : memref<24xi32, #tpu.memory_space<smem>>
    %c3_i32_32 = arith.constant 3 : i32
    %61 = arith.addi %3, %c3_i32_32 : i32
    %62 = arith.index_cast %61 : i32 to index
    %63 = memref.load %arg2[%62] : memref<24xi32, #tpu.memory_space<smem>>
    %64 = arith.index_cast %60 : i32 to index
    %c0_33 = arith.constant 0 : index
    %65 = vector.load %arg7[%64, %c0_33] : memref<32x128xf32, #tpu.memory_space<vmem>>, vector<1x128xf32>
    %c3 = arith.constant 3 : index
    %c0_34 = arith.constant 0 : index
    %66 = vector.load %arg8[%c3, %c0_34] : memref<8x128xf32, #tpu.memory_space<vmem>>, vector<1x128xf32>
    tpu.vector_store %arg8[%c3, %c0_34], %65 {strides = array<i32>} : memref<8x128xf32, #tpu.memory_space<vmem>>, vector<1x128xf32>,
    %67 = arith.index_cast %63 : i32 to index
    %c0_35 = arith.constant 0 : index
    %68 = vector.load %arg7[%67, %c0_35] : memref<32x128xf32, #tpu.memory_space<vmem>>, vector<1x128xf32>
    %c3_36 = arith.constant 3 : index
    %c0_37 = arith.constant 0 : index
    %69 = vector.load %arg9[%c3_36, %c0_37] : memref<8x128xf32, #tpu.memory_space<vmem>>, vector<1x128xf32>
    tpu.vector_store %arg9[%c3_36, %c0_37], %68 {strides = array<i32>} : memref<8x128xf32, #tpu.memory_space<vmem>>, vector<1x128xf32>,
    %70 = arith.index_cast %60 : i32 to index
    %c0_38 = arith.constant 0 : index
    %71 = vector.load %arg6[%70, %c0_38] : memref<32x128xf32, #tpu.memory_space<vmem>>, vector<1x128xf32>
    %72 = arith.index_cast %63 : i32 to index
    %c0_39 = arith.constant 0 : index
    %73 = vector.load %arg6[%72, %c0_39] : memref<32x128xf32, #tpu.memory_space<vmem>>, vector<1x128xf32>
    %74 = arith.addf %71, %73 : vector<1x128xf32>
    %c3_40 = arith.constant 3 : index
    %c0_41 = arith.constant 0 : index
    %75 = vector.load %arg10[%c3_40, %c0_41] : memref<8x128xf32, #tpu.memory_space<vmem>>, vector<1x128xf32>
    tpu.vector_store %arg10[%c3_40, %c0_41], %74 {strides = array<i32>} : memref<8x128xf32, #tpu.memory_space<vmem>>, vector<1x128xf32>,
    %c4_i32 = arith.constant 4 : i32
    %76 = arith.addi %3, %c4_i32 : i32
    %77 = arith.index_cast %76 : i32 to index
    %78 = memref.load %arg1[%77] : memref<24xi32, #tpu.memory_space<smem>>
    %c4_i32_42 = arith.constant 4 : i32
    %79 = arith.addi %3, %c4_i32_42 : i32
    %80 = arith.index_cast %79 : i32 to index
    %81 = memref.load %arg2[%80] : memref<24xi32, #tpu.memory_space<smem>>
    %82 = arith.index_cast %78 : i32 to index
    %c0_43 = arith.constant 0 : index
    %83 = vector.load %arg7[%82, %c0_43] : memref<32x128xf32, #tpu.memory_space<vmem>>, vector<1x128xf32>
    %c4 = arith.constant 4 : index
    %c0_44 = arith.constant 0 : index
    %84 = vector.load %arg8[%c4, %c0_44] : memref<8x128xf32, #tpu.memory_space<vmem>>, vector<1x128xf32>
    tpu.vector_store %arg8[%c4, %c0_44], %83 {strides = array<i32>} : memref<8x128xf32, #tpu.memory_space<vmem>>, vector<1x128xf32>,
    %85 = arith.index_cast %81 : i32 to index
    %c0_45 = arith.constant 0 : index
    %86 = vector.load %arg7[%85, %c0_45] : memref<32x128xf32, #tpu.memory_space<vmem>>, vector<1x128xf32>
    %c4_46 = arith.constant 4 : index
    %c0_47 = arith.constant 0 : index
    %87 = vector.load %arg9[%c4_46, %c0_47] : memref<8x128xf32, #tpu.memory_space<vmem>>, vector<1x128xf32>
    tpu.vector_store %arg9[%c4_46, %c0_47], %86 {strides = array<i32>} : memref<8x128xf32, #tpu.memory_space<vmem>>, vector<1x128xf32>,
    %88 = arith.index_cast %78 : i32 to index
    %c0_48 = arith.constant 0 : index
    %89 = vector.load %arg6[%88, %c0_48] : memref<32x128xf32, #tpu.memory_space<vmem>>, vector<1x128xf32>
    %90 = arith.index_cast %81 : i32 to index
    %c0_49 = arith.constant 0 : index
    %91 = vector.load %arg6[%90, %c0_49] : memref<32x128xf32, #tpu.memory_space<vmem>>, vector<1x128xf32>
    %92 = arith.addf %89, %91 : vector<1x128xf32>
    %c4_50 = arith.constant 4 : index
    %c0_51 = arith.constant 0 : index
    %93 = vector.load %arg10[%c4_50, %c0_51] : memref<8x128xf32, #tpu.memory_space<vmem>>, vector<1x128xf32>
    tpu.vector_store %arg10[%c4_50, %c0_51], %92 {strides = array<i32>} : memref<8x128xf32, #tpu.memory_space<vmem>>, vector<1x128xf32>,
    %c5_i32 = arith.constant 5 : i32
    %94 = arith.addi %3, %c5_i32 : i32
    %95 = arith.index_cast %94 : i32 to index
    %96 = memref.load %arg1[%95] : memref<24xi32, #tpu.memory_space<smem>>
    %c5_i32_52 = arith.constant 5 : i32
    %97 = arith.addi %3, %c5_i32_52 : i32
    %98 = arith.index_cast %97 : i32 to index
    %99 = memref.load %arg2[%98] : memref<24xi32, #tpu.memory_space<smem>>
    %100 = arith.index_cast %96 : i32 to index
    %c0_53 = arith.constant 0 : index
    %101 = vector.load %arg7[%100, %c0_53] : memref<32x128xf32, #tpu.memory_space<vmem>>, vector<1x128xf32>
    %c5 = arith.constant 5 : index
    %c0_54 = arith.constant 0 : index
    %102 = vector.load %arg8[%c5, %c0_54] : memref<8x128xf32, #tpu.memory_space<vmem>>, vector<1x128xf32>
    tpu.vector_store %arg8[%c5, %c0_54], %101 {strides = array<i32>} : memref<8x128xf32, #tpu.memory_space<vmem>>, vector<1x128xf32>,
    %103 = arith.index_cast %99 : i32 to index
    %c0_55 = arith.constant 0 : index
    %104 = vector.load %arg7[%103, %c0_55] : memref<32x128xf32, #tpu.memory_space<vmem>>, vector<1x128xf32>
    %c5_56 = arith.constant 5 : index
    %c0_57 = arith.constant 0 : index
    %105 = vector.load %arg9[%c5_56, %c0_57] : memref<8x128xf32, #tpu.memory_space<vmem>>, vector<1x128xf32>
    tpu.vector_store %arg9[%c5_56, %c0_57], %104 {strides = array<i32>} : memref<8x128xf32, #tpu.memory_space<vmem>>, vector<1x128xf32>,
    %106 = arith.index_cast %96 : i32 to index
    %c0_58 = arith.constant 0 : index
    %107 = vector.load %arg6[%106, %c0_58] : memref<32x128xf32, #tpu.memory_space<vmem>>, vector<1x128xf32>
    %108 = arith.index_cast %99 : i32 to index
    %c0_59 = arith.constant 0 : index
    %109 = vector.load %arg6[%108, %c0_59] : memref<32x128xf32, #tpu.memory_space<vmem>>, vector<1x128xf32>
    %110 = arith.addf %107, %109 : vector<1x128xf32>
    %c5_60 = arith.constant 5 : index
    %c0_61 = arith.constant 0 : index
    %111 = vector.load %arg10[%c5_60, %c0_61] : memref<8x128xf32, #tpu.memory_space<vmem>>, vector<1x128xf32>
    tpu.vector_store %arg10[%c5_60, %c0_61], %110 {strides = array<i32>} : memref<8x128xf32, #tpu.memory_space<vmem>>, vector<1x128xf32>,
    %c6_i32 = arith.constant 6 : i32
    %112 = arith.addi %3, %c6_i32 : i32
    %113 = arith.index_cast %112 : i32 to index
    %114 = memref.load %arg1[%113] : memref<24xi32, #tpu.memory_space<smem>>
    %c6_i32_62 = arith.constant 6 : i32
    %115 = arith.addi %3, %c6_i32_62 : i32
    %116 = arith.index_cast %115 : i32 to index
    %117 = memref.load %arg2[%116] : memref<24xi32, #tpu.memory_space<smem>>
    %118 = arith.index_cast %114 : i32 to index
    %c0_63 = arith.constant 0 : index
    %119 = vector.load %arg7[%118, %c0_63] : memref<32x128xf32, #tpu.memory_space<vmem>>, vector<1x128xf32>
    %c6 = arith.constant 6 : index
    %c0_64 = arith.constant 0 : index
    %120 = vector.load %arg8[%c6, %c0_64] : memref<8x128xf32, #tpu.memory_space<vmem>>, vector<1x128xf32>
    tpu.vector_store %arg8[%c6, %c0_64], %119 {strides = array<i32>} : memref<8x128xf32, #tpu.memory_space<vmem>>, vector<1x128xf32>,
    %121 = arith.index_cast %117 : i32 to index
    %c0_65 = arith.constant 0 : index
    %122 = vector.load %arg7[%121, %c0_65] : memref<32x128xf32, #tpu.memory_space<vmem>>, vector<1x128xf32>
    %c6_66 = arith.constant 6 : index
    %c0_67 = arith.constant 0 : index
    %123 = vector.load %arg9[%c6_66, %c0_67] : memref<8x128xf32, #tpu.memory_space<vmem>>, vector<1x128xf32>
    tpu.vector_store %arg9[%c6_66, %c0_67], %122 {strides = array<i32>} : memref<8x128xf32, #tpu.memory_space<vmem>>, vector<1x128xf32>,
    %124 = arith.index_cast %114 : i32 to index
    %c0_68 = arith.constant 0 : index
    %125 = vector.load %arg6[%124, %c0_68] : memref<32x128xf32, #tpu.memory_space<vmem>>, vector<1x128xf32>
    %126 = arith.index_cast %117 : i32 to index
    %c0_69 = arith.constant 0 : index
    %127 = vector.load %arg6[%126, %c0_69] : memref<32x128xf32, #tpu.memory_space<vmem>>, vector<1x128xf32>
    %128 = arith.addf %125, %127 : vector<1x128xf32>
    %c6_70 = arith.constant 6 : index
    %c0_71 = arith.constant 0 : index
    %129 = vector.load %arg10[%c6_70, %c0_71] : memref<8x128xf32, #tpu.memory_space<vmem>>, vector<1x128xf32>
    tpu.vector_store %arg10[%c6_70, %c0_71], %128 {strides = array<i32>} : memref<8x128xf32, #tpu.memory_space<vmem>>, vector<1x128xf32>,
    %c7_i32 = arith.constant 7 : i32
    %130 = arith.addi %3, %c7_i32 : i32
    %131 = arith.index_cast %130 : i32 to index
    %132 = memref.load %arg1[%131] : memref<24xi32, #tpu.memory_space<smem>>
    %c7_i32_72 = arith.constant 7 : i32
    %133 = arith.addi %3, %c7_i32_72 : i32
    %134 = arith.index_cast %133 : i32 to index
    %135 = memref.load %arg2[%134] : memref<24xi32, #tpu.memory_space<smem>>
    %136 = arith.index_cast %132 : i32 to index
    %c0_73 = arith.constant 0 : index
    %137 = vector.load %arg7[%136, %c0_73] : memref<32x128xf32, #tpu.memory_space<vmem>>, vector<1x128xf32>
    %c7 = arith.constant 7 : index
    %c0_74 = arith.constant 0 : index
    %138 = vector.load %arg8[%c7, %c0_74] : memref<8x128xf32, #tpu.memory_space<vmem>>, vector<1x128xf32>
    tpu.vector_store %arg8[%c7, %c0_74], %137 {strides = array<i32>} : memref<8x128xf32, #tpu.memory_space<vmem>>, vector<1x128xf32>,
    %139 = arith.index_cast %135 : i32 to index
    %c0_75 = arith.constant 0 : index
    %140 = vector.load %arg7[%139, %c0_75] : memref<32x128xf32, #tpu.memory_space<vmem>>, vector<1x128xf32>
    %c7_76 = arith.constant 7 : index
    %c0_77 = arith.constant 0 : index
    %141 = vector.load %arg9[%c7_76, %c0_77] : memref<8x128xf32, #tpu.memory_space<vmem>>, vector<1x128xf32>
    tpu.vector_store %arg9[%c7_76, %c0_77], %140 {strides = array<i32>} : memref<8x128xf32, #tpu.memory_space<vmem>>, vector<1x128xf32>,
    %142 = arith.index_cast %132 : i32 to index
    %c0_78 = arith.constant 0 : index
    %143 = vector.load %arg6[%142, %c0_78] : memref<32x128xf32, #tpu.memory_space<vmem>>, vector<1x128xf32>
    %144 = arith.index_cast %135 : i32 to index
    %c0_79 = arith.constant 0 : index
    %145 = vector.load %arg6[%144, %c0_79] : memref<32x128xf32, #tpu.memory_space<vmem>>, vector<1x128xf32>
    %146 = arith.addf %143, %145 : vector<1x128xf32>
    %c7_80 = arith.constant 7 : index
    %c0_81 = arith.constant 0 : index
    %147 = vector.load %arg10[%c7_80, %c0_81] : memref<8x128xf32, #tpu.memory_space<vmem>>, vector<1x128xf32>
    tpu.vector_store %arg10[%c7_80, %c0_81], %146 {strides = array<i32>} : memref<8x128xf32, #tpu.memory_space<vmem>>, vector<1x128xf32>,
    %c0_82 = arith.constant 0 : index
    %c0_83 = arith.constant 0 : index
    %148 = vector.load %arg3[%c0_82, %c0_83] : memref<8x16xf32, #tpu.memory_space<vmem>>, vector<8x16xf32>
    %c0_84 = arith.constant 0 : index
    %c0_85 = arith.constant 0 : index
    %149 = vector.load %arg4[%c0_84, %c0_85] : memref<272x512xf32, #tpu.memory_space<vmem>>, vector<16x512xf32>
    %cst = arith.constant dense<0.000000e+00> : vector<8x512xf32>
    %150 = tpu.matmul %148, %149, %cst {dimension_numbers = #tpu.dot_dimension_numbers<[1], [0], [0], [1], [0, 0, 1, 1], [], []>} : vector<8x16xf32>, vector<16x512xf32>, vector<8x512xf32> -> vector<8x512xf32>
    %c0_86 = arith.constant 0 : index
    %c0_87 = arith.constant 0 : index
    %151 = vector.load %arg8[%c0_86, %c0_87] : memref<8x128xf32, #tpu.memory_space<vmem>>, vector<8x128xf32>
    %c16 = arith.constant 16 : index
    %c0_88 = arith.constant 0 : index
    %152 = vector.load %arg4[%c16, %c0_88] : memref<272x512xf32, #tpu.memory_space<vmem>>, vector<128x512xf32>
    %cst_89 = arith.constant dense<0.000000e+00> : vector<8x512xf32>
    %153 = tpu.matmul %151, %152, %cst_89 {dimension_numbers = #tpu.dot_dimension_numbers<[1], [0], [0], [1], [0, 0, 1, 1], [], []>} : vector<8x128xf32>, vector<128x512xf32>, vector<8x512xf32> -> vector<8x512xf32>
    %154 = arith.addf %150, %153 : vector<8x512xf32>
    %c0_90 = arith.constant 0 : index
    %c0_91 = arith.constant 0 : index
    %155 = vector.load %arg9[%c0_90, %c0_91] : memref<8x128xf32, #tpu.memory_space<vmem>>, vector<8x128xf32>
    %c144 = arith.constant 144 : index
    %c0_92 = arith.constant 0 : index
    %156 = vector.load %arg4[%c144, %c0_92] : memref<272x512xf32, #tpu.memory_space<vmem>>, vector<128x512xf32>
    %cst_93 = arith.constant dense<0.000000e+00> : vector<8x512xf32>
    %157 = tpu.matmul %155, %156, %cst_93 {dimension_numbers = #tpu.dot_dimension_numbers<[1], [0], [0], [1], [0, 0, 1, 1], [], []>} : vector<8x128xf32>, vector<128x512xf32>, vector<8x512xf32> -> vector<8x512xf32>
    %158 = arith.addf %154, %157 : vector<8x512xf32>
    %c0_94 = arith.constant 0 : index
    %c0_95 = arith.constant 0 : index
    %159 = vector.load %arg5[%c0_94, %c0_95] : memref<1x512xf32, #tpu.memory_space<vmem>>, vector<1x512xf32>
    %160 = vector.broadcast %159 : vector<1x512xf32> to vector<8x512xf32>
    %161 = arith.addf %158, %160 : vector<8x512xf32>
    %162 = vector.extract_strided_slice %161 {offsets = [0, 0], sizes = [8, 128], strides = [1, 1]} : vector<8x512xf32> to vector<8x128xf32>
    %163 = arith.negf %162 : vector<8x128xf32>
    %164 = math.exp %163 : vector<8x128xf32>
    %cst_96 = arith.constant 1.000000e+00 : f32
    %165 = vector.broadcast %cst_96 : f32 to vector<8x128xf32>
    %166 = arith.addf %165, %164 : vector<8x128xf32>
    %167 = arith.divf %165, %166 : vector<8x128xf32>
    %168 = vector.extract_strided_slice %161 {offsets = [0, 128], sizes = [8, 128], strides = [1, 1]} : vector<8x512xf32> to vector<8x128xf32>
    %169 = arith.negf %168 : vector<8x128xf32>
    %170 = math.exp %169 : vector<8x128xf32>
    %cst_97 = arith.constant 1.000000e+00 : f32
    %171 = vector.broadcast %cst_97 : f32 to vector<8x128xf32>
    %172 = arith.addf %171, %170 : vector<8x128xf32>
    %173 = arith.divf %171, %172 : vector<8x128xf32>
    %174 = vector.extract_strided_slice %161 {offsets = [0, 256], sizes = [8, 128], strides = [1, 1]} : vector<8x512xf32> to vector<8x128xf32>
    %175 = arith.negf %174 : vector<8x128xf32>
    %176 = math.exp %175 : vector<8x128xf32>
    %cst_98 = arith.constant 1.000000e+00 : f32
    %177 = vector.broadcast %cst_98 : f32 to vector<8x128xf32>
    %178 = arith.addf %177, %176 : vector<8x128xf32>
    %179 = arith.divf %177, %178 : vector<8x128xf32>
    %180 = vector.extract_strided_slice %161 {offsets = [0, 384], sizes = [8, 128], strides = [1, 1]} : vector<8x512xf32> to vector<8x128xf32>
    %181 = math.tanh %180 : vector<8x128xf32>
    %182 = arith.mulf %167, %181 : vector<8x128xf32>
    %c0_99 = arith.constant 0 : index
    %c0_100 = arith.constant 0 : index
    %183 = vector.load %arg10[%c0_99, %c0_100] : memref<8x128xf32, #tpu.memory_space<vmem>>, vector<8x128xf32>
    %184 = arith.mulf %173, %183 : vector<8x128xf32>
    %185 = arith.addf %182, %184 : vector<8x128xf32>
    %186 = math.tanh %185 : vector<8x128xf32>
    %187 = arith.mulf %179, %186 : vector<8x128xf32>
    %c1_i32_101 = arith.constant 1 : i32
    %188 = arith.addi %arg0, %c1_i32_101 : i32
    %c8_i32_102 = arith.constant 8 : i32
    %189 = arith.muli %188, %c8_i32_102 : i32
    %190 = tpu.assume_multiple %189, 8 : i32
    %191 = arith.index_cast %190 : i32 to index
    %c0_103 = arith.constant 0 : index
    %192 = vector.load %arg6[%191, %c0_103] : memref<32x128xf32, #tpu.memory_space<vmem>>, vector<8x128xf32>
    tpu.vector_store %arg6[%191, %c0_103], %185 {strides = array<i32>} : memref<32x128xf32, #tpu.memory_space<vmem>>, vector<8x128xf32>,
    %193 = arith.index_cast %190 : i32 to index
    %c0_104 = arith.constant 0 : index
    %194 = vector.load %arg7[%193, %c0_104] : memref<32x128xf32, #tpu.memory_space<vmem>>, vector<8x128xf32>
    tpu.vector_store %arg7[%193, %c0_104], %187 {strides = array<i32>} : memref<32x128xf32, #tpu.memory_space<vmem>>, vector<8x128xf32>,
    return
  }
  func.func @transform_0(%arg0: i32, %arg1: memref<24xi32, #tpu.memory_space<smem>>, %arg2: memref<24xi32, #tpu.memory_space<smem>>) -> (i32, i32) {
    %c0_i32 = arith.constant 0 : i32
    %c0_i32_0 = arith.constant 0 : i32
    return %arg0, %c0_i32 : i32, i32
  }
  func.func @transform_1(%arg0: i32, %arg1: memref<24xi32, #tpu.memory_space<smem>>, %arg2: memref<24xi32, #tpu.memory_space<smem>>) -> (i32, i32) {
    %c0_i32 = arith.constant 0 : i32
    %c0_i32_0 = arith.constant 0 : i32
    %c0_i32_1 = arith.constant 0 : i32
    return %c0_i32, %c0_i32_0 : i32, i32
  }
  func.func @transform_2(%arg0: i32, %arg1: memref<24xi32, #tpu.memory_space<smem>>, %arg2: memref<24xi32, #tpu.memory_space<smem>>) -> (i32, i32) {
    %c0_i32 = arith.constant 0 : i32
    %c0_i32_0 = arith.constant 0 : i32
    %c0_i32_1 = arith.constant 0 : i32
    return %c0_i32, %c0_i32_0 : i32, i32
  }
  func.func @transform_3(%arg0: i32, %arg1: memref<24xi32, #tpu.memory_space<smem>>, %arg2: memref<24xi32, #tpu.memory_space<smem>>) -> (i32, i32) {
    %c0_i32 = arith.constant 0 : i32
    %c0_i32_0 = arith.constant 0 : i32
    %c0_i32_1 = arith.constant 0 : i32
    return %c0_i32, %c0_i32_0 : i32, i32
  }
  func.func @transform_4(%arg0: i32, %arg1: memref<24xi32, #tpu.memory_space<smem>>, %arg2: memref<24xi32, #tpu.memory_space<smem>>) -> (i32, i32) {
    %c0_i32 = arith.constant 0 : i32
    %c0_i32_0 = arith.constant 0 : i32
    %c0_i32_1 = arith.constant 0 : i32
    return %c0_i32, %c0_i32_0 : i32, i32
  }
}

</mosaic_0001>

<llo_original>
// kernel: tpu_custom_call.1
$region0: #{tpu_custom_call.1}
  #allocation0 [shape = 'u32[]', space=smem, size = 0x4, offset = 0x4, fixed_abs, tag = 'smem constant byte address 0x4 - core index']
  #allocation1 [shape = 'u32[144,128]{1,0:T(1,128)}', space=vmem, size = 0x12000, scoped, tag = 'internal scratch']
  #allocation2 [shape = 'f32[8,128]{1,0:T(8,128)}', space=vmem, size = 0x1000, scoped, tag = 'scratch operand']
  #allocation3 [shape = 'f32[8,128]{1,0:T(8,128)}', space=vmem, size = 0x1000, scoped, tag = 'scratch operand']
  #allocation4 [shape = 'f32[8,128]{1,0:T(8,128)}', space=vmem, size = 0x1000, scoped, tag = 'scratch operand']
  #allocation5 [shape = 's32[1]{0}', space=sflag, size = 0x4, scoped, tag = 'scoped memory for tpu_custom_call.1']
  #allocation6 [shape = 'u8[512]{0}', space=smem, size = 0x200, scoped, tag = 'prefetched SMEM operand 0']
  #allocation7 [shape = 'u8[512]{0}', space=smem, size = 0x200, scoped, tag = 'prefetched SMEM operand 1']
  %s0 = inlined_call_operand.vmem [shape: s32[24], index: 0, kind: input, shape index: {}]
  %s1 = inlined_call_operand.vmem [shape: s32[24], index: 1, kind: input, shape index: {}]
  %s2 = inlined_call_operand.vmem [shape: f32[24,16], index: 2, kind: input, shape index: {}]
  %s3 = inlined_call_operand.hbm [shape: f32[272,512], index: 3, kind: input, shape index: {}]
  %s4 = inlined_call_operand.vmem [shape: f32[1,512], index: 4, kind: input, shape index: {}]
  %s5 = inlined_call_operand.hbm [shape: f32[32,128], index: 5, kind: output, shape index: {0}]
  %s6 = inlined_call_operand.hbm [shape: f32[32,128], index: 6, kind: output, shape index: {1}]
  %7 = xla_tuple %s5, %s6
  %s8 = sld [smem:[#allocation0]]
  $region61: #{tpu_custom_call.1} parent=0
    _
  %s10 = ssub.s32 1, %s8
  %s11 = scalar_select 0, %s10, %s8
  %s12 = sshll.u32 %s0, 4
  %s13 = int_to_ptr.vmem [resolvable:$true] %s12
  %15 = dma.vmem_to_smem %s13, 16, [#allocation6], [#allocation5]
  %s16 = sshll.u32 %s1, 4
  %s17 = int_to_ptr.vmem [resolvable:$true] %s16
  %19 = dma.vmem_to_smem %s17, 16, [#allocation7], [#allocation5]
  %20 = dma.done [#allocation5], 32
  %21 = sfence
  $region1: #{tpu_custom_call.1} parent=0
    #allocation8 [shape = 'u8[557056]{0}', space=vmem, size = 0x88000, scoped, tag = 'input window, operand 3, single buffered']
    #allocation9 [shape = 's32[2]{0}', space=sflag, size = 0x8, scoped, tag = 'scoped memory for tpu_custom_call.1']
    #allocation10 [shape = 's32[2]{0}', space=sflag, size = 0x8, scoped, tag = 'scoped memory for tpu_custom_call.1']
    #allocation11 [shape = 'u8[16384]{0}', space=vmem, size = 0x4000, scoped, tag = 'output window, operand 0, single buffered']
    #allocation12 [shape = 'u8[16384]{0}', space=vmem, size = 0x4000, scoped, tag = 'output window, operand 1, single buffered']
    #allocation13 [shape = 's32[1]{0}', space=sflag, size = 0x4, scoped, tag = 'scoped memory for tpu_custom_call.1']
    %22 = vsyncpa [#allocation9], 0
    %23 = vsyncpa [#allocation10], 0
    %24 = vsyncpa [#allocation13], 0
    loop: start=0, step=1, limit=5
    $region2: #{tpu_custom_call.1} parent=1 // loop_pre_header
      _
    $region3: #{tpu_custom_call.1} parent=1 // loop_header
      %s26 = sphi 0, %s30
      %p27 = scmp.ge.s32.totalorder %s26, 5
      %s36 = sphi 0, %s38
      %s39 = sphi 0, %s36
      %s40 = sphi 0, %s39
      %s56 = sphi 0, %s40
      %s60 = sphi 0, %s60
      %s62 = sphi 0, %s60
      %s63 = sphi 0, %s62
      %s77 = sphi 0, %s63
      %s81 = sphi 0, %s81
      %s83 = sphi 0, %s81
      %s84 = sphi 0, %s83
      %s98 = sphi 0, %s84
      %s102 = sphi 0, %s102
      %s104 = sphi 0, %s102
      %s105 = sphi 0, %s104
      %s119 = sphi 0, %s105
      %s123 = sphi 0, %s123
      %s125 = sphi 0, %s123
      %s126 = sphi 0, %s125
      %s140 = sphi 0, %s126
    $region4: #{tpu_custom_call.1} parent=1 // loop_header_branch
      %29 = sbr.rel (%p27) target = $region8
    $region5: #{tpu_custom_call.1} parent=1 // loop_body
      %s31 = ssub.s32 %s26, 1
      %s32 = ssub.s32 %s26, 2
      %s33 = sadd.s32 %s26, 1
      %s34 = ssub.s32 %s26, %s33
      %p35 = scmp.eq.s32.totalorder %s34, 0
      %s37 = sadd.s32 %s36, 1
      %s38 = scalar_select %p35, %s36, %s37
      %p41 = pneg %p35
      %p42 = scmp.eq.s32.totalorder %s26, 2
      %p43 = por %p41, %p42
      %p44 = scmp.ne.s32.totalorder %s36, %s39
      %p45 = scmp.eq.s32.totalorder %s26, 0
      %p46 = por %p44, %p45
      %p47 = scmp.ne.s32.totalorder %s36, %s39
      %p48 = scmp.eq.s32.totalorder %s31, 2
      %p49 = por %p47, %p48
      %p50 = scmp.ne.s32.totalorder %s39, %s40
      %p51 = scmp.eq.s32.totalorder %s31, 0
      %p52 = por %p50, %p51
      %p53 = scmp.ne.s32.totalorder %s39, %s40
      %p54 = scmp.eq.s32.totalorder %s32, 2
      %p55 = por %p53, %p54
      %p57 = scmp.ne.s32.totalorder %s40, %s56
      %p58 = scmp.eq.s32.totalorder %s32, 0
      %p59 = por %p57, %p58
      %s61 = sadd.s32 %s60, 1
      %p64 = scmp.eq.s32.totalorder %s26, 2
      %p65 = scmp.ne.s32.totalorder %s60, %s62
      %p66 = scmp.eq.s32.totalorder %s26, 0
      %p67 = por %p65, %p66
      %p68 = scmp.ne.s32.totalorder %s60, %s62
      %p69 = scmp.eq.s32.totalorder %s31, 2
      %p70 = por %p68, %p69
      %p71 = scmp.ne.s32.totalorder %s62, %s63
      %p72 = scmp.eq.s32.totalorder %s31, 0
      %p73 = por %p71, %p72
      %p74 = scmp.ne.s32.totalorder %s62, %s63
      %p75 = scmp.eq.s32.totalorder %s32, 2
      %p76 = por %p74, %p75
      %p78 = scmp.ne.s32.totalorder %s63, %s77
      %p79 = scmp.eq.s32.totalorder %s32, 0
      %p80 = por %p78, %p79
      %s82 = sadd.s32 %s81, 1
      %p85 = scmp.eq.s32.totalorder %s26, 2
      %p86 = scmp.ne.s32.totalorder %s81, %s83
      %p87 = scmp.eq.s32.totalorder %s26, 0
      %p88 = por %p86, %p87
      %p89 = scmp.ne.s32.totalorder %s81, %s83
      %p90 = scmp.eq.s32.totalorder %s31, 2
      %p91 = por %p89, %p90
      %p92 = scmp.ne.s32.totalorder %s83, %s84
      %p93 = scmp.eq.s32.totalorder %s31, 0
      %p94 = por %p92, %p93
      %p95 = scmp.ne.s32.totalorder %s83, %s84
      %p96 = scmp.eq.s32.totalorder %s32, 2
      %p97 = por %p95, %p96
      %p99 = scmp.ne.s32.totalorder %s84, %s98
      %p100 = scmp.eq.s32.totalorder %s32, 0
      %p101 = por %p99, %p100
      %s103 = sadd.s32 %s102, 1
      %p106 = scmp.eq.s32.totalorder %s26, 2
      %p107 = scmp.ne.s32.totalorder %s102, %s104
      %p108 = scmp.eq.s32.totalorder %s26, 0
      %p109 = por %p107, %p108
      %p110 = scmp.ne.s32.totalorder %s102, %s104
      %p111 = scmp.eq.s32.totalorder %s31, 2
      %p112 = por %p110, %p111
      %p113 = scmp.ne.s32.totalorder %s104, %s105
      %p114 = scmp.eq.s32.totalorder %s31, 0
      %p115 = por %p113, %p114
      %p116 = scmp.ne.s32.totalorder %s104, %s105
      %p117 = scmp.eq.s32.totalorder %s32, 2
      %p118 = por %p116, %p117
      %p120 = scmp.ne.s32.totalorder %s105, %s119
      %p121 = scmp.eq.s32.totalorder %s32, 0
      %p122 = por %p120, %p121
      %s124 = sadd.s32 %s123, 1
      %p127 = scmp.eq.s32.totalorder %s26, 2
      %p128 = scmp.ne.s32.totalorder %s123, %s125
      %p129 = scmp.eq.s32.totalorder %s26, 0
      %p130 = por %p128, %p129
      %p131 = scmp.ne.s32.totalorder %s123, %s125
      %p132 = scmp.eq.s32.totalorder %s31, 2
      %p133 = por %p131, %p132
      %p134 = scmp.ne.s32.totalorder %s125, %s126
      %p135 = scmp.eq.s32.totalorder %s31, 0
      %p136 = por %p134, %p135
      %p137 = scmp.ne.s32.totalorder %s125, %s126
      %p138 = scmp.eq.s32.totalorder %s32, 2
      %p139 = por %p137, %p138
      %p141 = scmp.ne.s32.totalorder %s126, %s140
      %p142 = scmp.eq.s32.totalorder %s32, 0
      %p143 = por %p141, %p142
      %p144 = scmp.le.s32.totalorder 1, %s26
      %p145 = scmp.lt.s32.totalorder %s26, 4
      %p146 = pnand %p144, %p145
      %p147 = pneg %p146
      // Predicated region
      $region9: #{tpu_custom_call.1} parent=5 // pred_check
        _
      $region10: #{tpu_custom_call.1} parent=5 // pred_check_branch
        %149 = sbr.rel (%p146) target = $region12
      $region11: #{tpu_custom_call.1} parent=5 // pred_region
        %s150 = ssub.s32 %s26, 1
        // Predicated region
        $region13: #{tpu_custom_call.1} parent=11 // pred_check
          %p151 = pneg %p73
        $region14: #{tpu_custom_call.1} parent=11 // pred_check_branch
          %153 = sbr.rel (%p151) target = $region16
        $region15: #{tpu_custom_call.1} parent=11 // pred_region
          %s155 = ssub.s32 17408, 17408
          %156 = vsyncadd [#allocation9], %s155
          %s157 = sshll.u32 [#allocation8], 4
          %s158 = int_to_ptr.vmem [resolvable:$true] %s157
          %163 = dma.hbm_to_vmem [thread:$0]  %s3, 17408, %s158, [#allocation9], 512, 512, 32
        $region16: #{tpu_custom_call.1} parent=11 // pred_fallthru
          _
        // Predicated region
        $region17: #{tpu_custom_call.1} parent=11 // pred_check
          %p164 = pneg %p94
        $region18: #{tpu_custom_call.1} parent=11 // pred_check_branch
          %166 = sbr.rel (%p164) target = $region20
        $region19: #{tpu_custom_call.1} parent=11 // pred_region
          _
        $region20: #{tpu_custom_call.1} parent=11 // pred_fallthru
          _
      $region12: #{tpu_custom_call.1} parent=5 // pred_fallthru
        _
      %p167 = scmp.lt.s32.totalorder %s26, 3
      // Predicated region
      $region21: #{tpu_custom_call.1} parent=5 // pred_check
        %p168 = pneg %p167
      $region22: #{tpu_custom_call.1} parent=5 // pred_check_branch
        %170 = sbr.rel (%p168) target = $region24
      $region23: #{tpu_custom_call.1} parent=5 // pred_region
        // Predicated region
        $region25: #{tpu_custom_call.1} parent=23 // pred_check
          %p171 = pneg %p46
        $region26: #{tpu_custom_call.1} parent=23 // pred_check_branch
          %173 = sbr.rel (%p171) target = $region28
        $region27: #{tpu_custom_call.1} parent=23 // pred_region
          %p174 = scmp.lt.s32.totalorder %s26, 2
          %s175 = scalar_select %p174, %s26, 2
          %s176 = smul.addr %s175, 8
          %s177 = scalar_lea.vmem %s2, %s176
        $region28: #{tpu_custom_call.1} parent=23 // pred_fallthru
          _
      $region24: #{tpu_custom_call.1} parent=5 // pred_fallthru
        _
      %p178 = scmp.le.s32.totalorder 1, %s26
      %p179 = scmp.lt.s32.totalorder %s26, 4
      %p180 = pnand %p178, %p179
      %p181 = pneg %p180
      // Predicated region
      $region29: #{tpu_custom_call.1} parent=5 // pred_check
        _
      $region30: #{tpu_custom_call.1} parent=5 // pred_check_branch
        %183 = sbr.rel (%p180) target = $region32
      $region31: #{tpu_custom_call.1} parent=5 // pred_region
        %s184 = ssub.s32 %s26, 1
        // Predicated region
        $region33: #{tpu_custom_call.1} parent=31 // pred_check
          %p185 = pneg %p73
        $region34: #{tpu_custom_call.1} parent=31 // pred_check_branch
          %187 = sbr.rel (%p185) target = $region36
        $region35: #{tpu_custom_call.1} parent=31 // pred_region
          %188 = dma.done [#allocation9], 17408
        $region36: #{tpu_custom_call.1} parent=31 // pred_fallthru
          _
        %p189 = scmp.lt.s32.totalorder %s31, 2
        %s190 = scalar_select %p189, %s31, 2
        %s191 = smul.addr %s190, 8
        %s192 = scalar_lea.vmem %s2, %s191
        %p193 = pneg %p52
        %p194 = pneg %p49
        %p195 = pneg %p73
        %p196 = pneg %p70
        %p197 = pneg %p94
        %p198 = pneg %p91
        %p199 = pneg %p115
        %p200 = pneg %p112
        %p201 = pneg %p136
        %p202 = pneg %p133
        %p203 = scmp.lt.s32.totalorder %s31, 2
        %s204 = scalar_select %p203, %s31, 2
        %s205 = smul.addr %s204, 8
        %s206 = scalar_lea.vmem %s2, %s205
        %p207 = scmp.eq.s32.totalorder %s31, 0
        // Predicated region
        $region37: #{tpu_custom_call.1} parent=31 // pred_check
          %p208 = pneg %p207
        $region38: #{tpu_custom_call.1} parent=31 // pred_check_branch
          %210 = sbr.rel (%p208) target = $region40
        $region39: #{tpu_custom_call.1} parent=31 // pred_region
          %211 = vst [vmem:[#allocation11] sm:$0xff] 0.0
          %212 = vst [vmem:[#allocation12] sm:$0xff] 0.0
        $region40: #{tpu_custom_call.1} parent=31 // pred_fallthru
          _
        %s213 = smul.u32 %s31, 8
        %s214 = sld [smem:[#allocation6 + %s213]]
        %s215 = sld [smem:[#allocation7 + %s213]]
        %s216 = scalar_lea.vmem [#allocation12], %s214
        %v217 = vld [vmem:[%s216] sm:$0x1]
        %218 = vst [vmem:[#allocation2] sm:$0x1] %v217
        %s219 = scalar_lea.vmem [#allocation12], %s215
        %v220 = vld [vmem:[%s219] sm:$0x1]
        %221 = vst [vmem:[#allocation3] sm:$0x1] %v220
        %s222 = scalar_lea.vmem [#allocation11], %s214
        %v223 = vld [vmem:[%s222] sm:$0x1]
        %s224 = scalar_lea.vmem [#allocation11], %s215
        %v225 = vld [vmem:[%s224] sm:$0x1]
        %v226 = vadd.f32 %v223, %v225
        %227 = vst [vmem:[#allocation4] sm:$0x1] %v226
        %s228 = sadd.s32 %s213, 1
        %s229 = sld [smem:[#allocation6 + %s228]]
        %s230 = sld [smem:[#allocation7 + %s228]]
        %s231 = scalar_lea.vmem [#allocation12], %s229
        %v232 = vld [vmem:[%s231] sm:$0x1]
        %233 = vst [vmem:[#allocation2 + $0x1] sm:$0x1] %v232
        %s234 = scalar_lea.vmem [#allocation12], %s230
        %v235 = vld [vmem:[%s234] sm:$0x1]
        %236 = vst [vmem:[#allocation3 + $0x1] sm:$0x1] %v235
        %s237 = scalar_lea.vmem [#allocation11], %s229
        %v238 = vld [vmem:[%s237] sm:$0x1]
        %s239 = scalar_lea.vmem [#allocation11], %s230
        %v240 = vld [vmem:[%s239] sm:$0x1]
        %v241 = vadd.f32 %v238, %v240
        %242 = vst [vmem:[#allocation4 + $0x1] sm:$0x1] %v241
        %s243 = sadd.s32 %s213, 2
        %s244 = sld [smem:[#allocation6 + %s243]]
        %s245 = sld [smem:[#allocation7 + %s243]]
        %s246 = scalar_lea.vmem [#allocation12], %s244
        %v247 = vld [vmem:[%s246] sm:$0x1]
        %248 = vst [vmem:[#allocation2 + $0x2] sm:$0x1] %v247
        %s249 = scalar_lea.vmem [#allocation12], %s245
        %v250 = vld [vmem:[%s249] sm:$0x1]
        %251 = vst [vmem:[#allocation3 + $0x2] sm:$0x1] %v250
        %s252 = scalar_lea.vmem [#allocation11], %s244
        %v253 = vld [vmem:[%s252] sm:$0x1]
        %s254 = scalar_lea.vmem [#allocation11], %s245
        %v255 = vld [vmem:[%s254] sm:$0x1]
        %v256 = vadd.f32 %v253, %v255
        %257 = vst [vmem:[#allocation4 + $0x2] sm:$0x1] %v256
        %s258 = sadd.s32 %s213, 3
        %s259 = sld [smem:[#allocation6 + %s258]]
        %s260 = sld [smem:[#allocation7 + %s258]]
        %s261 = scalar_lea.vmem [#allocation12], %s259
        %v262 = vld [vmem:[%s261] sm:$0x1]
        %263 = vst [vmem:[#allocation2 + $0x3] sm:$0x1] %v262
        %s264 = scalar_lea.vmem [#allocation12], %s260
        %v265 = vld [vmem:[%s264] sm:$0x1]
        %266 = vst [vmem:[#allocation3 + $0x3] sm:$0x1] %v265
        %s267 = scalar_lea.vmem [#allocation11], %s259
        %v268 = vld [vmem:[%s267] sm:$0x1]
        %s269 = scalar_lea.vmem [#allocation11], %s260
        %v270 = vld [vmem:[%s269] sm:$0x1]
        %v271 = vadd.f32 %v268, %v270
        %272 = vst [vmem:[#allocation4 + $0x3] sm:$0x1] %v271
        %s273 = sadd.s32 %s213, 4
        %s274 = sld [smem:[#allocation6 + %s273]]
        %s275 = sld [smem:[#allocation7 + %s273]]
        %s276 = scalar_lea.vmem [#allocation12], %s274
        %v277 = vld [vmem:[%s276] sm:$0x1]
        %278 = vst [vmem:[#allocation2 + $0x4] sm:$0x1] %v277
        %s279 = scalar_lea.vmem [#allocation12], %s275
        %v280 = vld [vmem:[%s279] sm:$0x1]
        %281 = vst [vmem:[#allocation3 + $0x4] sm:$0x1] %v280
        %s282 = scalar_lea.vmem [#allocation11], %s274
        %v283 = vld [vmem:[%s282] sm:$0x1]
        %s284 = scalar_lea.vmem [#allocation11], %s275
        %v285 = vld [vmem:[%s284] sm:$0x1]
        %v286 = vadd.f32 %v283, %v285
        %287 = vst [vmem:[#allocation4 + $0x4] sm:$0x1] %v286
        %s288 = sadd.s32 %s213, 5
        %s289 = sld [smem:[#allocation6 + %s288]]
        %s290 = sld [smem:[#allocation7 + %s288]]
        %s291 = scalar_lea.vmem [#allocation12], %s289
        %v292 = vld [vmem:[%s291] sm:$0x1]
        %293 = vst [vmem:[#allocation2 + $0x5] sm:$0x1] %v292
        %s294 = scalar_lea.vmem [#allocation12], %s290
        %v295 = vld [vmem:[%s294] sm:$0x1]
        %296 = vst [vmem:[#allocation3 + $0x5] sm:$0x1] %v295
        %s297 = scalar_lea.vmem [#allocation11], %s289
        %v298 = vld [vmem:[%s297] sm:$0x1]
        %s299 = scalar_lea.vmem [#allocation11], %s290
        %v300 = vld [vmem:[%s299] sm:$0x1]
        %v301 = vadd.f32 %v298, %v300
        %302 = vst [vmem:[#allocation4 + $0x5] sm:$0x1] %v301
        %s303 = sadd.s32 %s213, 6
        %s304 = sld [smem:[#allocation6 + %s303]]
        %s305 = sld [smem:[#allocation7 + %s303]]
        %s306 = scalar_lea.vmem [#allocation12], %s304
        %v307 = vld [vmem:[%s306] sm:$0x1]
        %308 = vst [vmem:[#allocation2 + $0x6] sm:$0x1] %v307
        %s309 = scalar_lea.vmem [#allocation12], %s305
        %v310 = vld [vmem:[%s309] sm:$0x1]
        %311 = vst [vmem:[#allocation3 + $0x6] sm:$0x1] %v310
        %s312 = scalar_lea.vmem [#allocation11], %s304
        %v313 = vld [vmem:[%s312] sm:$0x1]
        %s314 = scalar_lea.vmem [#allocation11], %s305
        %v315 = vld [vmem:[%s314] sm:$0x1]
        %v316 = vadd.f32 %v313, %v315
        %317 = vst [vmem:[#allocation4 + $0x6] sm:$0x1] %v316
        %s318 = sadd.s32 %s213, 7
        %s319 = sld [smem:[#allocation6 + %s318]]
        %s320 = sld [smem:[#allocation7 + %s318]]
        %s321 = scalar_lea.vmem [#allocation12], %s319
        %v322 = vld [vmem:[%s321] sm:$0x1]
        %323 = vst [vmem:[#allocation2 + $0x7] sm:$0x1] %v322
        %s324 = scalar_lea.vmem [#allocation12], %s320
        %v325 = vld [vmem:[%s324] sm:$0x1]
        %326 = vst [vmem:[#allocation3 + $0x7] sm:$0x1] %v325
        %s327 = scalar_lea.vmem [#allocation11], %s319
        %v328 = vld [vmem:[%s327] sm:$0x1]
        %s329 = scalar_lea.vmem [#allocation11], %s320
        %v330 = vld [vmem:[%s329] sm:$0x1]
        %v331 = vadd.f32 %v328, %v330
        %332 = vst [vmem:[#allocation4 + $0x7] sm:$0x1] %v331
        %v333 = vld [vmem:[%s206] sm:$0xff]
        %v334 = vld [vmem:[#allocation8] sm:$0xff]
        %v335 = vld [vmem:[#allocation8 + $0x8] sm:$0xff]
        %v336 = vld [vmem:[#allocation8 + $0x10] sm:$0xff]
        %v337 = vld [vmem:[#allocation8 + $0x18] sm:$0xff]
        %v338 = vld [vmem:[#allocation8 + $0x20] sm:$0xff]
        %v339 = vld [vmem:[#allocation8 + $0x28] sm:$0xff]
        %v340 = vld [vmem:[#allocation8 + $0x30] sm:$0xff]
        %v341 = vld [vmem:[#allocation8 + $0x38] sm:$0xff]
        %v342 = vld [vmem:[#allocation2] sm:$0xff]
        %v343 = vld [vmem:[#allocation8 + $0x40] sm:$0xff]
        %v344 = vld [vmem:[#allocation8 + $0x48] sm:$0xff]
        %v345 = vld [vmem:[#allocation8 + $0x50] sm:$0xff]
        %v346 = vld [vmem:[#allocation8 + $0x58] sm:$0xff]
        %v347 = vld [vmem:[#allocation8 + $0x60] sm:$0xff]
        %v348 = vld [vmem:[#allocation8 + $0x68] sm:$0xff]
        %v349 = vld [vmem:[#allocation8 + $0x70] sm:$0xff]
        %v350 = vld [vmem:[#allocation8 + $0x78] sm:$0xff]
        %v351 = vld [vmem:[#allocation8 + $0x80] sm:$0xff]
        %v352 = vld [vmem:[#allocation8 + $0x88] sm:$0xff]
        %v353 = vld [vmem:[#allocation8 + $0x90] sm:$0xff]
        %v354 = vld [vmem:[#allocation8 + $0x98] sm:$0xff]
        %v355 = vld [vmem:[#allocation8 + $0xa0] sm:$0xff]
        %v356 = vld [vmem:[#allocation8 + $0xa8] sm:$0xff]
        %v357 = vld [vmem:[#allocation8 + $0xb0] sm:$0xff]
        %v358 = vld [vmem:[#allocation8 + $0xb8] sm:$0xff]
        %v359 = vld [vmem:[#allocation8 + $0xc0] sm:$0xff]
        %v360 = vld [vmem:[#allocation8 + $0xc8] sm:$0xff]
        %v361 = vld [vmem:[#allocation8 + $0xd0] sm:$0xff]
        %v362 = vld [vmem:[#allocation8 + $0xd8] sm:$0xff]
        %v363 = vld [vmem:[#allocation8 + $0xe0] sm:$0xff]
        %v364 = vld [vmem:[#allocation8 + $0xe8] sm:$0xff]
        %v365 = vld [vmem:[#allocation8 + $0xf0] sm:$0xff]
        %v366 = vld [vmem:[#allocation8 + $0xf8] sm:$0xff]
        %v367 = vld [vmem:[#allocation8 + $0x100] sm:$0xff]
        %v368 = vld [vmem:[#allocation8 + $0x108] sm:$0xff]
        %v369 = vld [vmem:[#allocation8 + $0x110] sm:$0xff]
        %v370 = vld [vmem:[#allocation8 + $0x118] sm:$0xff]
        %v371 = vld [vmem:[#allocation8 + $0x120] sm:$0xff]
        %v372 = vld [vmem:[#allocation8 + $0x128] sm:$0xff]
        %v373 = vld [vmem:[#allocation8 + $0x130] sm:$0xff]
        %v374 = vld [vmem:[#allocation8 + $0x138] sm:$0xff]
        %v375 = vld [vmem:[#allocation8 + $0x140] sm:$0xff]
        %v376 = vld [vmem:[#allocation8 + $0x148] sm:$0xff]
        %v377 = vld [vmem:[#allocation8 + $0x150] sm:$0xff]
        %v378 = vld [vmem:[#allocation8 + $0x158] sm:$0xff]
        %v379 = vld [vmem:[#allocation8 + $0x160] sm:$0xff]
        %v380 = vld [vmem:[#allocation8 + $0x168] sm:$0xff]
        %v381 = vld [vmem:[#allocation8 + $0x170] sm:$0xff]
        %v382 = vld [vmem:[#allocation8 + $0x178] sm:$0xff]
        %v383 = vld [vmem:[#allocation8 + $0x180] sm:$0xff]
        %v384 = vld [vmem:[#allocation8 + $0x188] sm:$0xff]
        %v385 = vld [vmem:[#allocation8 + $0x190] sm:$0xff]
        %v386 = vld [vmem:[#allocation8 + $0x198] sm:$0xff]
        %v387 = vld [vmem:[#allocation8 + $0x1a0] sm:$0xff]
        %v388 = vld [vmem:[#allocation8 + $0x1a8] sm:$0xff]
        %v389 = vld [vmem:[#allocation8 + $0x1b0] sm:$0xff]
        %v390 = vld [vmem:[#allocation8 + $0x1b8] sm:$0xff]
        %v391 = vld [vmem:[#allocation8 + $0x1c0] sm:$0xff]
        %v392 = vld [vmem:[#allocation8 + $0x1c8] sm:$0xff]
        %v393 = vld [vmem:[#allocation8 + $0x1d0] sm:$0xff]
        %v394 = vld [vmem:[#allocation8 + $0x1d8] sm:$0xff]
        %v395 = vld [vmem:[#allocation8 + $0x1e0] sm:$0xff]
        %v396 = vld [vmem:[#allocation8 + $0x1e8] sm:$0xff]
        %v397 = vld [vmem:[#allocation8 + $0x1f0] sm:$0xff]
        %v398 = vld [vmem:[#allocation8 + $0x1f8] sm:$0xff]
        %v399 = vld [vmem:[#allocation8 + $0x200] sm:$0xff]
        %v400 = vld [vmem:[#allocation8 + $0x208] sm:$0xff]
        %v401 = vld [vmem:[#allocation8 + $0x210] sm:$0xff]
        %v402 = vld [vmem:[#allocation8 + $0x218] sm:$0xff]
        %v403 = vld [vmem:[#allocation8 + $0x220] sm:$0xff]
        %v404 = vld [vmem:[#allocation8 + $0x228] sm:$0xff]
        %v405 = vld [vmem:[#allocation8 + $0x230] sm:$0xff]
        %v406 = vld [vmem:[#allocation8 + $0x238] sm:$0xff]
        %407 = vmatprep.subr.mxu0 %v404
        %408 = vmatpush1.msra.mxu0 %v403
        %409 = vmatprep.subr.mxu0 %v400
        %410 = vmatpush1.msra.mxu0 %v399
        %411 = vmatprep.subr.mxu0 %v396
        %412 = vmatpush1.msra.mxu0 %v395
        %413 = vmatprep.subr.mxu0 %v392
        %414 = vmatpush1.msra.mxu0 %v391
        %415 = vmatprep.subr.mxu0 %v388
        %416 = vmatpush1.msra.mxu0 %v387
        %417 = vmatprep.subr.mxu0 %v384
        %418 = vmatpush1.msra.mxu0 %v383
        %419 = vmatprep.subr.mxu0 %v380
        %420 = vmatpush1.msra.mxu0 %v379
        %421 = vmatprep.subr.mxu0 %v376
        %422 = vmatpush1.msra.mxu0 %v375
        %423 = vmatprep.subr.mxu0 %v372
        %424 = vmatpush1.msra.mxu0 %v371
        %425 = vmatprep.subr.mxu0 %v368
        %426 = vmatpush1.msra.mxu0 %v367
        %427 = vmatprep.subr.mxu0 %v364
        %428 = vmatpush1.msra.mxu0 %v363
        %429 = vmatprep.subr.mxu0 %v360
        %430 = vmatpush1.msra.mxu0 %v359
        %431 = vmatprep.subr.mxu0 %v356
        %432 = vmatpush1.msra.mxu0 %v355
        %433 = vmatprep.subr.mxu0 %v352
        %434 = vmatpush1.msra.mxu0 %v351
        %435 = vmatprep.subr.mxu0 %v348
        %436 = vmatpush1.msra.mxu0 %v347
        %437 = vmatprep.subr.mxu0 %v344
        %438 = vmatpush1.msra.mxu0 %v343
        %439 = vmatprep.subr.mxu0 0.0
        %440 = vmatpush2.msra.mxu0 0.0
        %441 = vmatprep.subr.mxu0 0.0
        %442 = vmatpush2.msra.mxu0 0.0
        %443 = vmatprep.subr.mxu0 0.0
        %444 = vmatpush2.msra.mxu0 0.0
        %445 = vmatprep.subr.mxu0 0.0
        %446 = vmatpush2.msra.mxu0 0.0
        %447 = vmatprep.subr.mxu0 0.0
        %448 = vmatpush2.msra.mxu0 0.0
        %449 = vmatprep.subr.mxu0 0.0
        %450 = vmatpush2.msra.mxu0 0.0
        %451 = vmatprep.subr.mxu0 0.0
        %452 = vmatpush2.msra.mxu0 0.0
        %453 = vmatprep.subr.mxu0 0.0
        %454 = vmatpush2.msra.mxu0 0.0
        %455 = vmatprep.subr.mxu0 0.0
        %456 = vmatpush2.msra.mxu0 0.0
        %457 = vmatprep.subr.mxu0 0.0
        %458 = vmatpush2.msra.mxu0 0.0
        %459 = vmatprep.subr.mxu0 0.0
        %460 = vmatpush2.msra.mxu0 0.0
        %461 = vmatprep.subr.mxu0 0.0
        %462 = vmatpush2.msra.mxu0 0.0
        %463 = vmatprep.subr.mxu0 0.0
        %464 = vmatpush2.msra.mxu0 0.0
        %465 = vmatprep.subr.mxu0 0.0
        %466 = vmatpush2.msra.mxu0 0.0
        %467 = vmatprep.subr.mxu0 0.0
        %468 = vmatpush2.msra.mxu0 0.0
        %469 = vmatprep.subr.mxu0 0.0
        %470 = vmatpush2.msra.mxu0 0.0
        %471 = vmatprep.mubr.f32.mxu0 0.0
        %472 = vmatmul.mubr.f32.gmra.mxu0 %v342
        %v473 = vpop.f32.mrf.mxu0
        %v474 = vadd.f32 0.0, %v473
        %v475 = vpop.f32.mrf.mxu0
        %v476 = vadd.f32 0.0, %v475
        %477 = vdwg.mxu0
        %478 = vmatprep.subr.mxu0 %v406
        %479 = vmatpush1.msra.mxu0 %v405
        %480 = vmatprep.subr.mxu0 %v402
        %481 = vmatpush1.msra.mxu0 %v401
        %482 = vmatprep.subr.mxu0 %v398
        %483 = vmatpush1.msra.mxu0 %v397
        %484 = vmatprep.subr.mxu0 %v394
        %485 = vmatpush1.msra.mxu0 %v393
        %486 = vmatprep.subr.mxu0 %v390
        %487 = vmatpush1.msra.mxu0 %v389
        %488 = vmatprep.subr.mxu0 %v386
        %489 = vmatpush1.msra.mxu0 %v385
        %490 = vmatprep.subr.mxu0 %v382
        %491 = vmatpush1.msra.mxu0 %v381
        %492 = vmatprep.subr.mxu0 %v378
        %493 = vmatpush1.msra.mxu0 %v377
        %494 = vmatprep.subr.mxu0 %v374
        %495 = vmatpush1.msra.mxu0 %v373
        %496 = vmatprep.subr.mxu0 %v370
        %497 = vmatpush1.msra.mxu0 %v369
        %498 = vmatprep.subr.mxu0 %v366
        %499 = vmatpush1.msra.mxu0 %v365
        %500 = vmatprep.subr.mxu0 %v362
        %501 = vmatpush1.msra.mxu0 %v361
        %502 = vmatprep.subr.mxu0 %v358
        %503 = vmatpush1.msra.mxu0 %v357
        %504 = vmatprep.subr.mxu0 %v354
        %505 = vmatpush1.msra.mxu0 %v353
        %506 = vmatprep.subr.mxu0 %v350
        %507 = vmatpush1.msra.mxu0 %v349
        %508 = vmatprep.subr.mxu0 %v346
        %509 = vmatpush1.msra.mxu0 %v345
        %510 = vmatprep.subr.mxu0 0.0
        %511 = vmatpush2.msra.mxu0 0.0
        %512 = vmatprep.subr.mxu0 0.0
        %513 = vmatpush2.msra.mxu0 0.0
        %514 = vmatprep.subr.mxu0 0.0
        %515 = vmatpush2.msra.mxu0 0.0
        %516 = vmatprep.subr.mxu0 0.0
        %517 = vmatpush2.msra.mxu0 0.0
        %518 = vmatprep.subr.mxu0 0.0
        %519 = vmatpush2.msra.mxu0 0.0
        %520 = vmatprep.subr.mxu0 0.0
        %521 = vmatpush2.msra.mxu0 0.0
        %522 = vmatprep.subr.mxu0 0.0
        %523 = vmatpush2.msra.mxu0 0.0
        %524 = vmatprep.subr.mxu0 0.0
        %525 = vmatpush2.msra.mxu0 0.0
        %526 = vmatprep.subr.mxu0 0.0
        %527 = vmatpush2.msra.mxu0 0.0
        %528 = vmatprep.subr.mxu0 0.0
        %529 = vmatpush2.msra.mxu0 0.0
        %530 = vmatprep.subr.mxu0 0.0
        %531 = vmatpush2.msra.mxu0 0.0
        %532 = vmatprep.subr.mxu0 0.0
        %533 = vmatpush2.msra.mxu0 0.0
        %534 = vmatprep.subr.mxu0 0.0
        %535 = vmatpush2.msra.mxu0 0.0
        %536 = vmatprep.subr.mxu0 0.0
        %537 = vmatpush2.msra.mxu0 0.0
        %538 = vmatprep.subr.mxu0 0.0
        %539 = vmatpush2.msra.mxu0 0.0
        %540 = vmatprep.subr.mxu0 0.0
        %541 = vmatpush2.msra.mxu0 0.0
        %542 = vmatprep.mubr.f32.mxu0 0.0
        %543 = vmatmul.mubr.f32.gmra.mxu0 %v342
        %v544 = vpop.f32.mrf.mxu0
        %v545 = vadd.f32 0.0, %v544
        %v546 = vpop.f32.mrf.mxu0
        %v547 = vadd.f32 0.0, %v546
        %548 = vdwg.mxu0
        %vm549 = vcmask 130048
        %v551 = vsel %vm549, %v333, 0
        %553 = vmatprep.subr.mxu0 0.0
        %554 = vmatpush1.msra.mxu0 0.0
        %555 = vmatprep.subr.mxu0 0.0
        %556 = vmatpush1.msra.mxu0 0.0
        %557 = vmatprep.subr.mxu0 0.0
        %558 = vmatpush1.msra.mxu0 0.0
        %559 = vmatprep.subr.mxu0 0.0
        %560 = vmatpush1.msra.mxu0 0.0
        %561 = vmatprep.subr.mxu0 0.0
        %562 = vmatpush1.msra.mxu0 0.0
        %563 = vmatprep.subr.mxu0 0.0
        %564 = vmatpush1.msra.mxu0 0.0
        %565 = vmatprep.subr.mxu0 0.0
        %566 = vmatpush1.msra.mxu0 0.0
        %567 = vmatprep.subr.mxu0 0.0
        %568 = vmatpush1.msra.mxu0 0.0
        %569 = vmatprep.subr.mxu0 0.0
        %570 = vmatpush1.msra.mxu0 0.0
        %571 = vmatprep.subr.mxu0 0.0
        %572 = vmatpush1.msra.mxu0 0.0
        %573 = vmatprep.subr.mxu0 0.0
        %574 = vmatpush1.msra.mxu0 0.0
        %575 = vmatprep.subr.mxu0 0.0
        %576 = vmatpush1.msra.mxu0 0.0
        %577 = vmatprep.subr.mxu0 0.0
        %578 = vmatpush1.msra.mxu0 0.0
        %579 = vmatprep.subr.mxu0 0.0
        %580 = vmatpush1.msra.mxu0 0.0
        %581 = vmatprep.subr.mxu0 %v339
        %582 = vmatpush1.msra.mxu0 %v338
        %583 = vmatprep.subr.mxu0 %v335
        %584 = vmatpush1.msra.mxu0 %v334
        %585 = vmatprep.subr.mxu0 0.0
        %586 = vmatpush2.msra.mxu0 0.0
        %587 = vmatprep.subr.mxu0 0.0
        %588 = vmatpush2.msra.mxu0 0.0
        %589 = vmatprep.subr.mxu0 0.0
        %590 = vmatpush2.msra.mxu0 0.0
        %591 = vmatprep.subr.mxu0 0.0
        %592 = vmatpush2.msra.mxu0 0.0
        %593 = vmatprep.subr.mxu0 0.0
        %594 = vmatpush2.msra.mxu0 0.0
        %595 = vmatprep.subr.mxu0 0.0
        %596 = vmatpush2.msra.mxu0 0.0
        %597 = vmatprep.subr.mxu0 0.0
        %598 = vmatpush2.msra.mxu0 0.0
        %599 = vmatprep.subr.mxu0 0.0
        %600 = vmatpush2.msra.mxu0 0.0
        %601 = vmatprep.subr.mxu0 0.0
        %602 = vmatpush2.msra.mxu0 0.0
        %603 = vmatprep.subr.mxu0 0.0
        %604 = vmatpush2.msra.mxu0 0.0
        %605 = vmatprep.subr.mxu0 0.0
        %606 = vmatpush2.msra.mxu0 0.0
        %607 = vmatprep.subr.mxu0 0.0
        %608 = vmatpush2.msra.mxu0 0.0
        %609 = vmatprep.subr.mxu0 0.0
        %610 = vmatpush2.msra.mxu0 0.0
        %611 = vmatprep.subr.mxu0 0.0
        %612 = vmatpush2.msra.mxu0 0.0
        %613 = vmatprep.subr.mxu0 0.0
        %614 = vmatpush2.msra.mxu0 0.0
        %615 = vmatprep.subr.mxu0 0.0
        %616 = vmatpush2.msra.mxu0 0.0
        %617 = vmatprep.mubr.f32.mxu0 0.0
        %618 = vmatmul.mubr.f32.gmra.mxu0 %v551
        %v619 = vpop.f32.mrf.mxu0
        %v620 = vadd.f32 %v474, %v619
        %v621 = vpop.f32.mrf.mxu0
        %v622 = vadd.f32 %v476, %v621
        %623 = vdwg.mxu0
        %624 = vmatprep.subr.mxu0 0.0
        %625 = vmatpush1.msra.mxu0 0.0
        %626 = vmatprep.subr.mxu0 0.0
        %627 = vmatpush1.msra.mxu0 0.0
        %628 = vmatprep.subr.mxu0 0.0
        %629 = vmatpush1.msra.mxu0 0.0
        %630 = vmatprep.subr.mxu0 0.0
        %631 = vmatpush1.msra.mxu0 0.0
        %632 = vmatprep.subr.mxu0 0.0
        %633 = vmatpush1.msra.mxu0 0.0
        %634 = vmatprep.subr.mxu0 0.0
        %635 = vmatpush1.msra.mxu0 0.0
        %636 = vmatprep.subr.mxu0 0.0
        %637 = vmatpush1.msra.mxu0 0.0
        %638 = vmatprep.subr.mxu0 0.0
        %639 = vmatpush1.msra.mxu0 0.0
        %640 = vmatprep.subr.mxu0 0.0
        %641 = vmatpush1.msra.mxu0 0.0
        %642 = vmatprep.subr.mxu0 0.0
        %643 = vmatpush1.msra.mxu0 0.0
        %644 = vmatprep.subr.mxu0 0.0
        %645 = vmatpush1.msra.mxu0 0.0
        %646 = vmatprep.subr.mxu0 0.0
        %647 = vmatpush1.msra.mxu0 0.0
        %648 = vmatprep.subr.mxu0 0.0
        %649 = vmatpush1.msra.mxu0 0.0
        %650 = vmatprep.subr.mxu0 0.0
        %651 = vmatpush1.msra.mxu0 0.0
        %652 = vmatprep.subr.mxu0 %v341
        %653 = vmatpush1.msra.mxu0 %v340
        %654 = vmatprep.subr.mxu0 %v337
        %655 = vmatpush1.msra.mxu0 %v336
        %656 = vmatprep.subr.mxu0 0.0
        %657 = vmatpush2.msra.mxu0 0.0
        %658 = vmatprep.subr.mxu0 0.0
        %659 = vmatpush2.msra.mxu0 0.0
        %660 = vmatprep.subr.mxu0 0.0
        %661 = vmatpush2.msra.mxu0 0.0
        %662 = vmatprep.subr.mxu0 0.0
        %663 = vmatpush2.msra.mxu0 0.0
        %664 = vmatprep.subr.mxu0 0.0
        %665 = vmatpush2.msra.mxu0 0.0
        %666 = vmatprep.subr.mxu0 0.0
        %667 = vmatpush2.msra.mxu0 0.0
        %668 = vmatprep.subr.mxu0 0.0
        %669 = vmatpush2.msra.mxu0 0.0
        %670 = vmatprep.subr.mxu0 0.0
        %671 = vmatpush2.msra.mxu0 0.0
        %672 = vmatprep.subr.mxu0 0.0
        %673 = vmatpush2.msra.mxu0 0.0
        %674 = vmatprep.subr.mxu0 0.0
        %675 = vmatpush2.msra.mxu0 0.0
        %676 = vmatprep.subr.mxu0 0.0
        %677 = vmatpush2.msra.mxu0 0.0
        %678 = vmatprep.subr.mxu0 0.0
        %679 = vmatpush2.msra.mxu0 0.0
        %680 = vmatprep.subr.mxu0 0.0
        %681 = vmatpush2.msra.mxu0 0.0
        %682 = vmatprep.subr.mxu0 0.0
        %683 = vmatpush2.msra.mxu0 0.0
        %684 = vmatprep.subr.mxu0 0.0
        %685 = vmatpush2.msra.mxu0 0.0
        %686 = vmatprep.subr.mxu0 0.0
        %687 = vmatpush2.msra.mxu0 0.0
        %688 = vmatprep.mubr.f32.mxu0 0.0
        %689 = vmatmul.mubr.f32.gmra.mxu0 %v551
        %v690 = vpop.f32.mrf.mxu0
        %v691 = vadd.f32 %v545, %v690
        %v692 = vpop.f32.mrf.mxu0
        %v693 = vadd.f32 %v547, %v692
        %694 = vdwg.mxu0
        %v695 = vld [vmem:[#allocation3] sm:$0xff]
        %v696 = vld [vmem:[#allocation8 + $0x240] sm:$0xff]
        %v697 = vld [vmem:[#allocation8 + $0x248] sm:$0xff]
        %v698 = vld [vmem:[#allocation8 + $0x250] sm:$0xff]
        %v699 = vld [vmem:[#allocation8 + $0x258] sm:$0xff]
        %v700 = vld [vmem:[#allocation8 + $0x260] sm:$0xff]
        %v701 = vld [vmem:[#allocation8 + $0x268] sm:$0xff]
        %v702 = vld [vmem:[#allocation8 + $0x270] sm:$0xff]
        %v703 = vld [vmem:[#allocation8 + $0x278] sm:$0xff]
        %v704 = vld [vmem:[#allocation8 + $0x280] sm:$0xff]
        %v705 = vld [vmem:[#allocation8 + $0x288] sm:$0xff]
        %v706 = vld [vmem:[#allocation8 + $0x290] sm:$0xff]
        %v707 = vld [vmem:[#allocation8 + $0x298] sm:$0xff]
        %v708 = vld [vmem:[#allocation8 + $0x2a0] sm:$0xff]
        %v709 = vld [vmem:[#allocation8 + $0x2a8] sm:$0xff]
        %v710 = vld [vmem:[#allocation8 + $0x2b0] sm:$0xff]
        %v711 = vld [vmem:[#allocation8 + $0x2b8] sm:$0xff]
        %v712 = vld [vmem:[#allocation8 + $0x2c0] sm:$0xff]
        %v713 = vld [vmem:[#allocation8 + $0x2c8] sm:$0xff]
        %v714 = vld [vmem:[#allocation8 + $0x2d0] sm:$0xff]
        %v715 = vld [vmem:[#allocation8 + $0x2d8] sm:$0xff]
        %v716 = vld [vmem:[#allocation8 + $0x2e0] sm:$0xff]
        %v717 = vld [vmem:[#allocation8 + $0x2e8] sm:$0xff]
        %v718 = vld [vmem:[#allocation8 + $0x2f0] sm:$0xff]
        %v719 = vld [vmem:[#allocation8 + $0x2f8] sm:$0xff]
        %v720 = vld [vmem:[#allocation8 + $0x300] sm:$0xff]
        %v721 = vld [vmem:[#allocation8 + $0x308] sm:$0xff]
        %v722 = vld [vmem:[#allocation8 + $0x310] sm:$0xff]
        %v723 = vld [vmem:[#allocation8 + $0x318] sm:$0xff]
        %v724 = vld [vmem:[#allocation8 + $0x320] sm:$0xff]
        %v725 = vld [vmem:[#allocation8 + $0x328] sm:$0xff]
        %v726 = vld [vmem:[#allocation8 + $0x330] sm:$0xff]
        %v727 = vld [vmem:[#allocation8 + $0x338] sm:$0xff]
        %v728 = vld [vmem:[#allocation8 + $0x340] sm:$0xff]
        %v729 = vld [vmem:[#allocation8 + $0x348] sm:$0xff]
        %v730 = vld [vmem:[#allocation8 + $0x350] sm:$0xff]
        %v731 = vld [vmem:[#allocation8 + $0x358] sm:$0xff]
        %v732 = vld [vmem:[#allocation8 + $0x360] sm:$0xff]
        %v733 = vld [vmem:[#allocation8 + $0x368] sm:$0xff]
        %v734 = vld [vmem:[#allocation8 + $0x370] sm:$0xff]
        %v735 = vld [vmem:[#allocation8 + $0x378] sm:$0xff]
        %v736 = vld [vmem:[#allocation8 + $0x380] sm:$0xff]
        %v737 = vld [vmem:[#allocation8 + $0x388] sm:$0xff]
        %v738 = vld [vmem:[#allocation8 + $0x390] sm:$0xff]
        %v739 = vld [vmem:[#allocation8 + $0x398] sm:$0xff]
        %v740 = vld [vmem:[#allocation8 + $0x3a0] sm:$0xff]
        %v741 = vld [vmem:[#allocation8 + $0x3a8] sm:$0xff]
        %v742 = vld [vmem:[#allocation8 + $0x3b0] sm:$0xff]
        %v743 = vld [vmem:[#allocation8 + $0x3b8] sm:$0xff]
        %v744 = vld [vmem:[#allocation8 + $0x3c0] sm:$0xff]
        %v745 = vld [vmem:[#allocation8 + $0x3c8] sm:$0xff]
        %v746 = vld [vmem:[#allocation8 + $0x3d0] sm:$0xff]
        %v747 = vld [vmem:[#allocation8 + $0x3d8] sm:$0xff]
        %v748 = vld [vmem:[#allocation8 + $0x3e0] sm:$0xff]
        %v749 = vld [vmem:[#allocation8 + $0x3e8] sm:$0xff]
        %v750 = vld [vmem:[#allocation8 + $0x3f0] sm:$0xff]
        %v751 = vld [vmem:[#allocation8 + $0x3f8] sm:$0xff]
        %v752 = vld [vmem:[#allocation8 + $0x400] sm:$0xff]
        %v753 = vld [vmem:[#allocation8 + $0x408] sm:$0xff]
        %v754 = vld [vmem:[#allocation8 + $0x410] sm:$0xff]
        %v755 = vld [vmem:[#allocation8 + $0x418] sm:$0xff]
        %v756 = vld [vmem:[#allocation8 + $0x420] sm:$0xff]
        %v757 = vld [vmem:[#allocation8 + $0x428] sm:$0xff]
        %v758 = vld [vmem:[#allocation8 + $0x430] sm:$0xff]
        %v759 = vld [vmem:[#allocation8 + $0x438] sm:$0xff]
        %760 = vmatprep.subr.mxu0 %v757
        %761 = vmatpush1.msra.mxu0 %v756
        %762 = vmatprep.subr.mxu0 %v753
        %763 = vmatpush1.msra.mxu0 %v752
        %764 = vmatprep.subr.mxu0 %v749
        %765 = vmatpush1.msra.mxu0 %v748
        %766 = vmatprep.subr.mxu0 %v745
        %767 = vmatpush1.msra.mxu0 %v744
        %768 = vmatprep.subr.mxu0 %v741
        %769 = vmatpush1.msra.mxu0 %v740
        %770 = vmatprep.subr.mxu0 %v737
        %771 = vmatpush1.msra.mxu0 %v736
        %772 = vmatprep.subr.mxu0 %v733
        %773 = vmatpush1.msra.mxu0 %v732
        %774 = vmatprep.subr.mxu0 %v729
        %775 = vmatpush1.msra.mxu0 %v728
        %776 = vmatprep.subr.mxu0 %v725
        %777 = vmatpush1.msra.mxu0 %v724
        %778 = vmatprep.subr.mxu0 %v721
        %779 = vmatpush1.msra.mxu0 %v720
        %780 = vmatprep.subr.mxu0 %v717
        %781 = vmatpush1.msra.mxu0 %v716
        %782 = vmatprep.subr.mxu0 %v713
        %783 = vmatpush1.msra.mxu0 %v712
        %784 = vmatprep.subr.mxu0 %v709
        %785 = vmatpush1.msra.mxu0 %v708
        %786 = vmatprep.subr.mxu0 %v705
        %787 = vmatpush1.msra.mxu0 %v704
        %788 = vmatprep.subr.mxu0 %v701
        %789 = vmatpush1.msra.mxu0 %v700
        %790 = vmatprep.subr.mxu0 %v697
        %791 = vmatpush1.msra.mxu0 %v696
        %792 = vmatprep.subr.mxu0 0.0
        %793 = vmatpush2.msra.mxu0 0.0
        %794 = vmatprep.subr.mxu0 0.0
        %795 = vmatpush2.msra.mxu0 0.0
        %796 = vmatprep.subr.mxu0 0.0
        %797 = vmatpush2.msra.mxu0 0.0
        %798 = vmatprep.subr.mxu0 0.0
        %799 = vmatpush2.msra.mxu0 0.0
        %800 = vmatprep.subr.mxu0 0.0
        %801 = vmatpush2.msra.mxu0 0.0
        %802 = vmatprep.subr.mxu0 0.0
        %803 = vmatpush2.msra.mxu0 0.0
        %804 = vmatprep.subr.mxu0 0.0
        %805 = vmatpush2.msra.mxu0 0.0
        %806 = vmatprep.subr.mxu0 0.0
        %807 = vmatpush2.msra.mxu0 0.0
        %808 = vmatprep.subr.mxu0 0.0
        %809 = vmatpush2.msra.mxu0 0.0
        %810 = vmatprep.subr.mxu0 0.0
        %811 = vmatpush2.msra.mxu0 0.0
        %812 = vmatprep.subr.mxu0 0.0
        %813 = vmatpush2.msra.mxu0 0.0
        %814 = vmatprep.subr.mxu0 0.0
        %815 = vmatpush2.msra.mxu0 0.0
        %816 = vmatprep.subr.mxu0 0.0
        %817 = vmatpush2.msra.mxu0 0.0
        %818 = vmatprep.subr.mxu0 0.0
        %819 = vmatpush2.msra.mxu0 0.0
        %820 = vmatprep.subr.mxu0 0.0
        %821 = vmatpush2.msra.mxu0 0.0
        %822 = vmatprep.subr.mxu0 0.0
        %823 = vmatpush2.msra.mxu0 0.0
        %824 = vmatprep.mubr.f32.mxu0 0.0
        %825 = vmatmul.mubr.f32.gmra.mxu0 %v695
        %v826 = vpop.f32.mrf.mxu0
        %v827 = vadd.f32 0.0, %v826
        %v828 = vpop.f32.mrf.mxu0
        %v829 = vadd.f32 0.0, %v828
        %830 = vdwg.mxu0
        %831 = vmatprep.subr.mxu0 %v759
        %832 = vmatpush1.msra.mxu0 %v758
        %833 = vmatprep.subr.mxu0 %v755
        %834 = vmatpush1.msra.mxu0 %v754
        %835 = vmatprep.subr.mxu0 %v751
        %836 = vmatpush1.msra.mxu0 %v750
        %837 = vmatprep.subr.mxu0 %v747
        %838 = vmatpush1.msra.mxu0 %v746
        %839 = vmatprep.subr.mxu0 %v743
        %840 = vmatpush1.msra.mxu0 %v742
        %841 = vmatprep.subr.mxu0 %v739
        %842 = vmatpush1.msra.mxu0 %v738
        %843 = vmatprep.subr.mxu0 %v735
        %844 = vmatpush1.msra.mxu0 %v734
        %845 = vmatprep.subr.mxu0 %v731
        %846 = vmatpush1.msra.mxu0 %v730
        %847 = vmatprep.subr.mxu0 %v727
        %848 = vmatpush1.msra.mxu0 %v726
        %849 = vmatprep.subr.mxu0 %v723
        %850 = vmatpush1.msra.mxu0 %v722
        %851 = vmatprep.subr.mxu0 %v719
        %852 = vmatpush1.msra.mxu0 %v718
        %853 = vmatprep.subr.mxu0 %v715
        %854 = vmatpush1.msra.mxu0 %v714
        %855 = vmatprep.subr.mxu0 %v711
        %856 = vmatpush1.msra.mxu0 %v710
        %857 = vmatprep.subr.mxu0 %v707
        %858 = vmatpush1.msra.mxu0 %v706
        %859 = vmatprep.subr.mxu0 %v703
        %860 = vmatpush1.msra.mxu0 %v702
        %861 = vmatprep.subr.mxu0 %v699
        %862 = vmatpush1.msra.mxu0 %v698
        %863 = vmatprep.subr.mxu0 0.0
        %864 = vmatpush2.msra.mxu0 0.0
        %865 = vmatprep.subr.mxu0 0.0
        %866 = vmatpush2.msra.mxu0 0.0
        %867 = vmatprep.subr.mxu0 0.0
        %868 = vmatpush2.msra.mxu0 0.0
        %869 = vmatprep.subr.mxu0 0.0
        %870 = vmatpush2.msra.mxu0 0.0
        %871 = vmatprep.subr.mxu0 0.0
        %872 = vmatpush2.msra.mxu0 0.0
        %873 = vmatprep.subr.mxu0 0.0
        %874 = vmatpush2.msra.mxu0 0.0
        %875 = vmatprep.subr.mxu0 0.0
        %876 = vmatpush2.msra.mxu0 0.0
        %877 = vmatprep.subr.mxu0 0.0
        %878 = vmatpush2.msra.mxu0 0.0
        %879 = vmatprep.subr.mxu0 0.0
        %880 = vmatpush2.msra.mxu0 0.0
        %881 = vmatprep.subr.mxu0 0.0
        %882 = vmatpush2.msra.mxu0 0.0
        %883 = vmatprep.subr.mxu0 0.0
        %884 = vmatpush2.msra.mxu0 0.0
        %885 = vmatprep.subr.mxu0 0.0
        %886 = vmatpush2.msra.mxu0 0.0
        %887 = vmatprep.subr.mxu0 0.0
        %888 = vmatpush2.msra.mxu0 0.0
        %889 = vmatprep.subr.mxu0 0.0
        %890 = vmatpush2.msra.mxu0 0.0
        %891 = vmatprep.subr.mxu0 0.0
        %892 = vmatpush2.msra.mxu0 0.0
        %893 = vmatprep.subr.mxu0 0.0
        %894 = vmatpush2.msra.mxu0 0.0
        %895 = vmatprep.mubr.f32.mxu0 0.0
        %896 = vmatmul.mubr.f32.gmra.mxu0 %v695
        %v897 = vpop.f32.mrf.mxu0
        %v898 = vadd.f32 0.0, %v897
        %v899 = vpop.f32.mrf.mxu0
        %v900 = vadd.f32 0.0, %v899
        %901 = vdwg.mxu0
        %v902 = vadd.f32 %v620, %v827
        %v903 = vadd.f32 %v622, %v829
        %v904 = vadd.f32 %v691, %v898
        %v905 = vadd.f32 %v693, %v900
        %v906 = vld [vmem:[%s4] sm:$0xf]
        %v908 = vlaneseq
        %v909 = vshrl.u32 %v908, 7
        %v910 = vsub.s32 0, %v909
        %v911 = vrot.slane %v906, %v910
        %v912 = vlaneseq
        %v913 = vshrl.u32 %v912, 7
        %v914 = vsub.s32 1, %v913
        %v915 = vrot.slane %v906, %v914
        %v916 = vlaneseq
        %v917 = vshrl.u32 %v916, 7
        %v918 = vsub.s32 2, %v917
        %v919 = vrot.slane %v906, %v918
        %v920 = vlaneseq
        %v921 = vshrl.u32 %v920, 7
        %v922 = vsub.s32 3, %v921
        %v923 = vrot.slane %v906, %v922
        %v928 = vadd.f32 %v902, %v911
        %v929 = vadd.f32 %v903, %v915
        %v930 = vadd.f32 %v904, %v919
        %v931 = vadd.f32 %v905, %v923
        %v932 = vxor.u32 %v928, 2147483648
        %v933 = vmul.f32 %v932, 1.442695
        %v934 = vpow.pop %v933
        %v935 = vadd.f32 %v934, 1.0
        %v936 = vrcp.pop %v935
        %v937 = vmul.f32 1.0, %v936
        %v938 = vxor.u32 %v929, 2147483648
        %v939 = vmul.f32 %v938, 1.442695
        %v940 = vpow.pop %v939
        %v941 = vadd.f32 %v940, 1.0
        %v942 = vrcp.pop %v941
        %v943 = vmul.f32 1.0, %v942
        %v944 = vxor.u32 %v930, 2147483648
        %v945 = vmul.f32 %v944, 1.442695
        %v946 = vpow.pop %v945
        %v947 = vadd.f32 %v946, 1.0
        %v948 = vrcp.pop %v947
        %v949 = vmul.f32 1.0, %v948
        %v950 = vtanh.pop %v931
        %v951 = vmul.f32 %v937, %v950
        %v952 = vld [vmem:[#allocation4] sm:$0xff]
        %v953 = vmul.f32 %v943, %v952
        %v954 = vadd.f32 %v951, %v953
        %v955 = vtanh.pop %v954
        %v956 = vmul.f32 %v949, %v955
        %s957 = sadd.s32 %s31, 1
        %s958 = smul.u32 %s957, 8
        %s959 = scalar_lea.vmem [#allocation11], %s958
        %960 = vst [vmem:[%s959] sm:$0xff] %v954
        %s961 = scalar_lea.vmem [#allocation12], %s958
        %962 = vst [vmem:[%s961] sm:$0xff] %v956
        // Predicated region
        $region41: #{tpu_custom_call.1} parent=31 // pred_check
          %p963 = pneg %p112
        $region42: #{tpu_custom_call.1} parent=31 // pred_check_branch
          %965 = sbr.rel (%p963) target = $region44
        $region43: #{tpu_custom_call.1} parent=31 // pred_region
          %s967 = ssub.s32 512, 512
          %968 = vsyncadd [#allocation10], %s967
          %s969 = sshll.u32 [#allocation11], 4
          %s970 = int_to_ptr.vmem [resolvable:$true] %s969
          %975 = dma.vmem_to_hbm [thread:$0]  %s970, 512, %s5, [#allocation10], 128, 128, 8
        $region44: #{tpu_custom_call.1} parent=31 // pred_fallthru
          _
        // Predicated region
        $region45: #{tpu_custom_call.1} parent=31 // pred_check
          %p976 = pneg %p133
        $region46: #{tpu_custom_call.1} parent=31 // pred_check_branch
          %978 = sbr.rel (%p976) target = $region48
        $region47: #{tpu_custom_call.1} parent=31 // pred_region
          %s980 = ssub.s32 512, 512
          %981 = vsyncadd [#allocation13], %s980
          %s982 = sshll.u32 [#allocation12], 4
          %s983 = int_to_ptr.vmem [resolvable:$true] %s982
          %988 = dma.vmem_to_hbm [thread:$0]  %s983, 512, %s6, [#allocation13], 128, 128, 8
        $region48: #{tpu_custom_call.1} parent=31 // pred_fallthru
          _
        // Predicated region
        $region49: #{tpu_custom_call.1} parent=31 // pred_check
          %p989 = pneg %p112
        $region50: #{tpu_custom_call.1} parent=31 // pred_check_branch
          %991 = sbr.rel (%p989) target = $region52
        $region51: #{tpu_custom_call.1} parent=31 // pred_region
          %992 = dma.done [#allocation10], 512
        $region52: #{tpu_custom_call.1} parent=31 // pred_fallthru
          _
        // Predicated region
        $region53: #{tpu_custom_call.1} parent=31 // pred_check
          %p993 = pneg %p133
        $region54: #{tpu_custom_call.1} parent=31 // pred_check_branch
          %995 = sbr.rel (%p993) target = $region56
        $region55: #{tpu_custom_call.1} parent=31 // pred_region
          %996 = dma.done [#allocation13], 512
        $region56: #{tpu_custom_call.1} parent=31 // pred_fallthru
          _
      $region32: #{tpu_custom_call.1} parent=5 // pred_fallthru
        _
      %p997 = scmp.le.s32.totalorder 2, %s26
      // Predicated region
      $region57: #{tpu_custom_call.1} parent=5 // pred_check
        %p998 = pneg %p997
      $region58: #{tpu_custom_call.1} parent=5 // pred_check_branch
        %1000 = sbr.rel (%p998) target = $region60
      $region59: #{tpu_custom_call.1} parent=5 // pred_region
        %s1001 = ssub.s32 %s26, 2
      $region60: #{tpu_custom_call.1} parent=5 // pred_fallthru
        _
    $region6: #{tpu_custom_call.1} parent=1 // loop_footer
      %s30 = sadd.s32 1, %s26
    $region7: #{tpu_custom_call.1} parent=1 // loop_footer_branch
      %25 = sbr.rel target = $region3
    $region8: #{tpu_custom_call.1} parent=1 // loop_exit
      _
    %1002 = vsyncpa [#allocation9], 1
    %s1003 = scalar_lea.sflag [#allocation9], 1
    %1004 = vsyncpa %s1003, 1
    %1005 = vsyncpa [#allocation10], 1
    %s1006 = scalar_lea.sflag [#allocation10], 1
    %1007 = vsyncpa %s1006, 1
    %1008 = vsyncpa [#allocation13], 1

</llo_original>
